<compile_context>
chip_gen: v5e
topology: v5e:2x2
jax: 0.10.0
libtpu: 0.0.40
codegen_flags: <defaults>
</compile_context>

<pallas_src>
import jax
import jax.numpy as jnp
from jax.experimental import pallas as pl
from jax.experimental.pallas import tpu as pltpu


D_MODEL = 32
N_HEADS = 4
MLP_RATIO = 4
HEAD_SIZE = D_MODEL // N_HEADS
D_MLP = D_MODEL * MLP_RATIO
LN_EPS = 1e-5


def _layernorm(x, gamma, beta):
    # x: (R, D), gamma/beta: (1, D); biased variance like nn.LayerNorm.
    mean = jnp.mean(x, axis=-1, keepdims=True)
    var = jnp.mean((x - mean) ** 2, axis=-1, keepdims=True)
    inv = jax.lax.rsqrt(var + LN_EPS)
    return (x - mean) * inv * gamma + beta


def _gelu_exact(x):
    # nn.GELU() default = exact erf formulation
    return 0.5 * x * (1.0 + jax.lax.erf(x / jnp.sqrt(2.0).astype(x.dtype)))


def transformer_encoder_kernel(
    x_ref,
    ln1_g_ref, ln1_b_ref,
    wqkv_ref, bqkv_ref,
    wo_ref, bo_ref,
    ln2_g_ref, ln2_b_ref,
    w1_ref, b1_ref,
    w2_ref, b2_ref,
    o_ref,
):
    x = x_ref[0]                                                # (S, D) this batch elem

    # ---- attention branch: x + MHA(norm1(x)) -----------------------------
    h = _layernorm(x, ln1_g_ref[...], ln1_b_ref[...])           # (S, D)

    # Fused QKV projection: one MXU push of (S, D) @ (D, 3D).
    qkv = jnp.dot(h, wqkv_ref[...],
                  preferred_element_type=jnp.float32) + bqkv_ref[...]
    q = qkv[:, 0 * D_MODEL:1 * D_MODEL]
    k = qkv[:, 1 * D_MODEL:2 * D_MODEL]
    v = qkv[:, 2 * D_MODEL:3 * D_MODEL]

    scale = jnp.float32(HEAD_SIZE) ** -0.5

    # Head lane mask built in-kernel (iota + compare on VPU; no HBM operand).
    lane = jax.lax.broadcasted_iota(jnp.int32, (1, D_MODEL), 1)

    # TODO(synk): an optional user attention mask (mask==0 -> -inf) would be
    # added to `scores`; the forward pass under test uses mask=None.
    attn = jnp.zeros_like(x)                                    # (S, D) accumulator
    for hd in range(N_HEADS):                                   # static unroll
        in_head = (lane >= hd * HEAD_SIZE) & (lane < (hd + 1) * HEAD_SIZE)
        mh = jnp.where(in_head, 1.0, 0.0)                       # (1, D) head lane mask
        qh = q * mh                                             # zero non-head lanes
        vh = v * mh
        # Full-D contraction == per-head contraction (masked lanes contribute 0);
        # per-batch, so no cross-batch mask / wasted columns.
        scores = jnp.einsum("qd,kd->qk", qh, k,
                            preferred_element_type=jnp.float32) * scale
        scores = scores - jnp.max(scores, axis=-1, keepdims=True)
        p = jnp.exp(scores)
        denom = jnp.sum(p, axis=-1, keepdims=True)
        r = pl.reciprocal(denom, approx=True)                   # EUP vrcp
        r = r * (2.0 - denom * r)                               # one Newton step
        p = p * r
        # p @ (v * mask_h) lands only in head-h lanes; accumulation == concat.
        attn = attn + jnp.dot(p, vh, preferred_element_type=jnp.float32)

    attn = jnp.dot(attn, wo_ref[...],
                   preferred_element_type=jnp.float32) + bo_ref[...]
    x1 = x + attn                                               # residual (dropout = id)

    # ---- MLP branch: x1 + MLP(norm2(x1)) ---------------------------------
    h2 = _layernorm(x1, ln2_g_ref[...], ln2_b_ref[...])
    m = jnp.dot(h2, w1_ref[...], preferred_element_type=jnp.float32) + b1_ref[...]
    m = _gelu_exact(m)
    m = jnp.dot(m, w2_ref[...], preferred_element_type=jnp.float32) + b2_ref[...]

    # Single contiguous full-block store.
    o_ref[0] = (x1 + m).astype(o_ref.dtype)


def _const_spec(shape):
    # Weight tiles: same (full) block for every grid step -> stays resident.
    ndim = len(shape)
    return pl.BlockSpec(shape, lambda b, _n=ndim: (0,) * _n)


@jax.jit
def transformer_encoder(x, params):
    B, S, D = x.shape
    assert D == D_MODEL

    weight_ops = [
        params["ln1_g"], params["ln1_b"],
        params["wqkv"], params["bqkv"],
        params["wo"], params["bo"],
        params["ln2_g"], params["ln2_b"],
        params["w1"], params["b1"],
        params["w2"], params["b2"],
    ]

    in_specs = [pl.BlockSpec((1, S, D), lambda b: (b, 0, 0))]
    in_specs += [_const_spec(w.shape) for w in weight_ops]

    out = pl.pallas_call(
        transformer_encoder_kernel,
        out_shape=jax.ShapeDtypeStruct((B, S, D), x.dtype),
        grid=(B,),
        in_specs=in_specs,
        out_specs=pl.BlockSpec((1, S, D), lambda b: (b, 0, 0)),
        compiler_params=pltpu.CompilerParams(
            dimension_semantics=("parallel",)),
    )(x, *weight_ops)
    return out


def init_params(key):
    ks = jax.random.split(key, 6)

    def lin(k, fan_in, fan_out):
        kw, kb = jax.random.split(k)
        bound = 1.0 / jnp.sqrt(fan_in)
        w = jax.random.uniform(kw, (fan_in, fan_out), jnp.float32, -bound, bound)
        b = jax.random.uniform(kb, (1, fan_out), jnp.float32, -bound, bound)
        return w, b

    wq, bq = lin(ks[0], D_MODEL, D_MODEL)   # per-head Q/K/V weights (concat of heads)
    wk, bk = lin(ks[1], D_MODEL, D_MODEL)
    wv, bv = lin(ks[2], D_MODEL, D_MODEL)
    wo, bo = lin(ks[3], D_MODEL, D_MODEL)
    w1, b1 = lin(ks[4], D_MODEL, D_MLP)
    w2, b2 = lin(ks[5], D_MLP, D_MODEL)
    return {
        "ln1_g": jnp.ones((1, D_MODEL), jnp.float32),
        "ln1_b": jnp.zeros((1, D_MODEL), jnp.float32),
        # Q|K|V concatenated ONCE here, not per forward call.
        "wqkv": jnp.concatenate([wq, wk, wv], axis=1),
        "bqkv": jnp.concatenate([bq, bk, bv], axis=1),
        "wo": wo, "bo": bo,
        "ln2_g": jnp.ones((1, D_MODEL), jnp.float32),
        "ln2_b": jnp.zeros((1, D_MODEL), jnp.float32),
        "w1": w1, "b1": b1, "w2": w2, "b2": b2,
    }


def reference_encoder(x, p):
    def ln(h, g, b):
        mu = jnp.mean(h, -1, keepdims=True)
        var = jnp.mean((h - mu) ** 2, -1, keepdims=True)
        return (h - mu) * jax.lax.rsqrt(var + LN_EPS) * g + b

    h = ln(x, p["ln1_g"], p["ln1_b"])
    qkv = h @ p["wqkv"] + p["bqkv"]
    q = qkv[..., 0 * D_MODEL:1 * D_MODEL]
    k = qkv[..., 1 * D_MODEL:2 * D_MODEL]
    v = qkv[..., 2 * D_MODEL:3 * D_MODEL]
    outs = []
    for hd in range(N_HEADS):
        sl = slice(hd * HEAD_SIZE, (hd + 1) * HEAD_SIZE)
        s = jnp.einsum("bqd,bkd->bqk", q[..., sl], k[..., sl]) * (HEAD_SIZE ** -0.5)
        a = jax.nn.softmax(s, axis=-1)
        outs.append(jnp.einsum("bqk,bkd->bqd", a, v[..., sl]))
    attn = jnp.concatenate(outs, -1) @ p["wo"] + p["bo"]
    x1 = x + attn
    h2 = ln(x1, p["ln2_g"], p["ln2_b"])
    m = jax.nn.gelu(h2 @ p["w1"] + p["b1"], approximate=False) @ p["w2"] + p["b2"]
    return x1 + m


if __name__ == "__main__":
    key = jax.random.PRNGKey(0)
    kx, kp = jax.random.split(key)
    B, S = 2, 8
    x = jax.random.normal(kx, (B, S, D_MODEL), jnp.float32)
    params = init_params(kp)

    out = transformer_encoder(x, params)
    out = jax.block_until_ready(out)

    ref = reference_encoder(x, params)
    assert jnp.allclose(out, ref, atol=1e-4, rtol=1e-4), "mismatch vs reference"
    print("KERNEL_OK")
</pallas_src>

<mosaic_0001>
module attributes {stable_mosaic.version = 11 : i64} {
  func.func @transformer_encoder_kernel(%arg0: i32, %arg1: memref<1x8x32xf32, #tpu.memory_space<vmem>>, %arg2: memref<1x32xf32, #tpu.memory_space<vmem>>, %arg3: memref<1x32xf32, #tpu.memory_space<vmem>>, %arg4: memref<32x96xf32, #tpu.memory_space<vmem>>, %arg5: memref<1x96xf32, #tpu.memory_space<vmem>>, %arg6: memref<32x32xf32, #tpu.memory_space<vmem>>, %arg7: memref<1x32xf32, #tpu.memory_space<vmem>>, %arg8: memref<1x32xf32, #tpu.memory_space<vmem>>, %arg9: memref<1x32xf32, #tpu.memory_space<vmem>>, %arg10: memref<32x128xf32, #tpu.memory_space<vmem>>, %arg11: memref<1x128xf32, #tpu.memory_space<vmem>>, %arg12: memref<128x32xf32, #tpu.memory_space<vmem>>, %arg13: memref<1x32xf32, #tpu.memory_space<vmem>>, %arg14: memref<1x8x32xf32, #tpu.memory_space<vmem>>) attributes {dimension_semantics = [#tpu.dimension_semantics<parallel>], iteration_bounds = array<i64: 2>, scalar_prefetch = 0 : i64, scratch_operands = 0 : i64, tpu.core_type = #tpu.core_type<tc>, window_params = [{transform_indices = @transform_0, window_bounds = array<i64: 1, 8, 32>}, {pipeline_mode = #tpu.pipeline_mode<synchronous>, transform_indices = @transform_1, window_bounds = array<i64: 1, 32>}, {pipeline_mode = #tpu.pipeline_mode<synchronous>, transform_indices = @transform_2, window_bounds = array<i64: 1, 32>}, {pipeline_mode = #tpu.pipeline_mode<synchronous>, transform_indices = @transform_3, window_bounds = array<i64: 32, 96>}, {pipeline_mode = #tpu.pipeline_mode<synchronous>, transform_indices = @transform_4, window_bounds = array<i64: 1, 96>}, {pipeline_mode = #tpu.pipeline_mode<synchronous>, transform_indices = @transform_5, window_bounds = array<i64: 32, 32>}, {pipeline_mode = #tpu.pipeline_mode<synchronous>, transform_indices = @transform_6, window_bounds = array<i64: 1, 32>}, {pipeline_mode = #tpu.pipeline_mode<synchronous>, transform_indices = @transform_7, window_bounds = array<i64: 1, 32>}, {pipeline_mode = #tpu.pipeline_mode<synchronous>, transform_indices = @transform_8, window_bounds = array<i64: 1, 32>}, {pipeline_mode = #tpu.pipeline_mode<synchronous>, transform_indices = @transform_9, window_bounds = array<i64: 32, 128>}, {pipeline_mode = #tpu.pipeline_mode<synchronous>, transform_indices = @transform_10, window_bounds = array<i64: 1, 128>}, {pipeline_mode = #tpu.pipeline_mode<synchronous>, transform_indices = @transform_11, window_bounds = array<i64: 128, 32>}, {pipeline_mode = #tpu.pipeline_mode<synchronous>, transform_indices = @transform_12, window_bounds = array<i64: 1, 32>}, {transform_indices = @transform_13, window_bounds = array<i64: 1, 8, 32>}]} {
    %c0 = arith.constant 0 : index
    %c0_0 = arith.constant 0 : index
    %c0_1 = arith.constant 0 : index
    %0 = vector.load %arg1[%c0, %c0_0, %c0_1] : memref<1x8x32xf32, #tpu.memory_space<vmem>>, vector<1x8x32xf32>
    %1 = vector.shape_cast %0 : vector<1x8x32xf32> to vector<8x32xf32>
    %c0_2 = arith.constant 0 : index
    %c0_3 = arith.constant 0 : index
    %2 = vector.load %arg2[%c0_2, %c0_3] : memref<1x32xf32, #tpu.memory_space<vmem>>, vector<1x32xf32>
    %c0_4 = arith.constant 0 : index
    %c0_5 = arith.constant 0 : index
    %3 = vector.load %arg3[%c0_4, %c0_5] : memref<1x32xf32, #tpu.memory_space<vmem>>, vector<1x32xf32>
    %cst = arith.constant dense<0.000000e+00> : vector<8xf32>
    %4 = vector.multi_reduction <add>, %1, %cst [1] : vector<8x32xf32> to vector<8xf32>
    %5 = vector.shape_cast %4 : vector<8xf32> to vector<8x1xf32>
    %cst_6 = arith.constant 3.200000e+01 : f32
    %6 = vector.broadcast %cst_6 : f32 to vector<8x1xf32>
    %7 = arith.divf %5, %6 : vector<8x1xf32>
    %8 = vector.broadcast %7 : vector<8x1xf32> to vector<8x32xf32>
    %9 = arith.subf %1, %8 : vector<8x32xf32>
    %10 = arith.mulf %9, %9 : vector<8x32xf32>
    %cst_7 = arith.constant dense<0.000000e+00> : vector<8xf32>
    %11 = vector.multi_reduction <add>, %10, %cst_7 [1] : vector<8x32xf32> to vector<8xf32>
    %12 = vector.shape_cast %11 : vector<8xf32> to vector<8x1xf32>
    %cst_8 = arith.constant 3.200000e+01 : f32
    %13 = vector.broadcast %cst_8 : f32 to vector<8x1xf32>
    %14 = arith.divf %12, %13 : vector<8x1xf32>
    %cst_9 = arith.constant 9.99999974E-6 : f32
    %15 = vector.broadcast %cst_9 : f32 to vector<8x1xf32>
    %16 = arith.addf %14, %15 : vector<8x1xf32>
    %17 = math.rsqrt %16 : vector<8x1xf32>
    %18 = vector.broadcast %7 : vector<8x1xf32> to vector<8x32xf32>
    %19 = arith.subf %1, %18 : vector<8x32xf32>
    %20 = vector.broadcast %17 : vector<8x1xf32> to vector<8x32xf32>
    %21 = arith.mulf %19, %20 : vector<8x32xf32>
    %22 = vector.broadcast %2 : vector<1x32xf32> to vector<8x32xf32>
    %23 = arith.mulf %21, %22 : vector<8x32xf32>
    %24 = vector.broadcast %3 : vector<1x32xf32> to vector<8x32xf32>
    %25 = arith.addf %23, %24 : vector<8x32xf32>
    %c0_10 = arith.constant 0 : index
    %c0_11 = arith.constant 0 : index
    %26 = vector.load %arg4[%c0_10, %c0_11] : memref<32x96xf32, #tpu.memory_space<vmem>>, vector<32x96xf32>
    %cst_12 = arith.constant dense<0.000000e+00> : vector<8x96xf32>
    %27 = tpu.matmul %25, %26, %cst_12 {dimension_numbers = #tpu.dot_dimension_numbers<[1], [0], [0], [1], [0, 0, 1, 1], [], []>} : vector<8x32xf32>, vector<32x96xf32>, vector<8x96xf32> -> vector<8x96xf32>
    %c0_13 = arith.constant 0 : index
    %c0_14 = arith.constant 0 : index
    %28 = vector.load %arg5[%c0_13, %c0_14] : memref<1x96xf32, #tpu.memory_space<vmem>>, vector<1x96xf32>
    %29 = vector.broadcast %28 : vector<1x96xf32> to vector<8x96xf32>
    %30 = arith.addf %27, %29 : vector<8x96xf32>
    %31 = vector.extract_strided_slice %30 {offsets = [0, 0], sizes = [8, 32], strides = [1, 1]} : vector<8x96xf32> to vector<8x32xf32>
    %32 = vector.extract_strided_slice %30 {offsets = [0, 32], sizes = [8, 32], strides = [1, 1]} : vector<8x96xf32> to vector<8x32xf32>
    %33 = vector.extract_strided_slice %30 {offsets = [0, 64], sizes = [8, 32], strides = [1, 1]} : vector<8x96xf32> to vector<8x32xf32>
    %cst_15 = arith.constant 8.000000e+00 : f32
    %cst_16 = arith.constant -5.000000e-01 : f32
    %34 = math.powf %cst_15, %cst_16 : f32
    %35 = tpu.iota {dimensions = array<i32: 1>} : vector<1x32xi32>
    %cst_17 = arith.constant 0.000000e+00 : f32
    %36 = vector.broadcast %cst_17 : f32 to vector<8x32xf32>
    %c0_i32 = arith.constant 0 : i32
    %37 = vector.broadcast %c0_i32 : i32 to vector<1x32xi32>
    %38 = arith.cmpi sge, %35, %37 : vector<1x32xi32>
    %c8_i32 = arith.constant 8 : i32
    %39 = vector.broadcast %c8_i32 : i32 to vector<1x32xi32>
    %40 = arith.cmpi slt, %35, %39 : vector<1x32xi32>
    %41 = arith.andi %38, %40 : vector<1x32xi1>
    %cst_18 = arith.constant 1.000000e+00 : f32
    %cst_19 = arith.constant 0.000000e+00 : f32
    %42 = vector.broadcast %cst_18 : f32 to vector<1x32xf32>
    %43 = vector.broadcast %cst_19 : f32 to vector<1x32xf32>
    %44 = arith.select %41, %42, %43 : vector<1x32xi1>, vector<1x32xf32>
    %45 = vector.broadcast %44 : vector<1x32xf32> to vector<8x32xf32>
    %46 = arith.mulf %31, %45 : vector<8x32xf32>
    %47 = vector.broadcast %44 : vector<1x32xf32> to vector<8x32xf32>
    %48 = arith.mulf %33, %47 : vector<8x32xf32>
    "tpu.trace_start"() <{level = 10 : i32, message = "qd,kd->qk"}> : () -> ()
    %cst_20 = arith.constant dense<0.000000e+00> : vector<8x8xf32>
    %49 = tpu.matmul %46, %32, %cst_20 {dimension_numbers = #tpu.dot_dimension_numbers<[1], [1], [0], [0], [0, 0, 1, 0], [], []>} : vector<8x32xf32>, vector<8x32xf32>, vector<8x8xf32> -> vector<8x8xf32>
    "tpu.trace_stop"() : () -> ()
    %50 = vector.broadcast %34 : f32 to vector<8x8xf32>
    %51 = arith.mulf %49, %50 : vector<8x8xf32>
    %cst_21 = arith.constant dense<0xFF800000> : vector<8xf32>
    %52 = vector.multi_reduction <maximumf>, %51, %cst_21 [1] : vector<8x8xf32> to vector<8xf32>
    %53 = vector.shape_cast %52 : vector<8xf32> to vector<8x1xf32>
    %54 = vector.broadcast %53 : vector<8x1xf32> to vector<8x8xf32>
    %55 = arith.subf %51, %54 : vector<8x8xf32>
    %56 = math.exp %55 : vector<8x8xf32>
    %cst_22 = arith.constant dense<0.000000e+00> : vector<8xf32>
    %57 = vector.multi_reduction <add>, %56, %cst_22 [1] : vector<8x8xf32> to vector<8xf32>
    %58 = vector.shape_cast %57 : vector<8xf32> to vector<8x1xf32>
    %59 = tpu.reciprocal %58 {approx = true} : vector<8x1xf32> -> vector<8x1xf32>
    %60 = arith.mulf %58, %59 : vector<8x1xf32>
    %cst_23 = arith.constant 2.000000e+00 : f32
    %61 = vector.broadcast %cst_23 : f32 to vector<8x1xf32>
    %62 = arith.subf %61, %60 : vector<8x1xf32>
    %63 = arith.mulf %59, %62 : vector<8x1xf32>
    %64 = vector.broadcast %63 : vector<8x1xf32> to vector<8x8xf32>
    %65 = arith.mulf %56, %64 : vector<8x8xf32>
    %cst_24 = arith.constant dense<0.000000e+00> : vector<8x32xf32>
    %66 = tpu.matmul %65, %48, %cst_24 {dimension_numbers = #tpu.dot_dimension_numbers<[1], [0], [0], [1], [0, 0, 1, 1], [], []>} : vector<8x8xf32>, vector<8x32xf32>, vector<8x32xf32> -> vector<8x32xf32>
    %67 = arith.addf %36, %66 : vector<8x32xf32>
    %c8_i32_25 = arith.constant 8 : i32
    %68 = vector.broadcast %c8_i32_25 : i32 to vector<1x32xi32>
    %69 = arith.cmpi sge, %35, %68 : vector<1x32xi32>
    %c16_i32 = arith.constant 16 : i32
    %70 = vector.broadcast %c16_i32 : i32 to vector<1x32xi32>
    %71 = arith.cmpi slt, %35, %70 : vector<1x32xi32>
    %72 = arith.andi %69, %71 : vector<1x32xi1>
    %cst_26 = arith.constant 1.000000e+00 : f32
    %cst_27 = arith.constant 0.000000e+00 : f32
    %73 = vector.broadcast %cst_26 : f32 to vector<1x32xf32>
    %74 = vector.broadcast %cst_27 : f32 to vector<1x32xf32>
    %75 = arith.select %72, %73, %74 : vector<1x32xi1>, vector<1x32xf32>
    %76 = vector.broadcast %75 : vector<1x32xf32> to vector<8x32xf32>
    %77 = arith.mulf %31, %76 : vector<8x32xf32>
    %78 = vector.broadcast %75 : vector<1x32xf32> to vector<8x32xf32>
    %79 = arith.mulf %33, %78 : vector<8x32xf32>
    "tpu.trace_start"() <{level = 10 : i32, message = "qd,kd->qk"}> : () -> ()
    %cst_28 = arith.constant dense<0.000000e+00> : vector<8x8xf32>
    %80 = tpu.matmul %77, %32, %cst_28 {dimension_numbers = #tpu.dot_dimension_numbers<[1], [1], [0], [0], [0, 0, 1, 0], [], []>} : vector<8x32xf32>, vector<8x32xf32>, vector<8x8xf32> -> vector<8x8xf32>
    "tpu.trace_stop"() : () -> ()
    %81 = vector.broadcast %34 : f32 to vector<8x8xf32>
    %82 = arith.mulf %80, %81 : vector<8x8xf32>
    %cst_29 = arith.constant dense<0xFF800000> : vector<8xf32>
    %83 = vector.multi_reduction <maximumf>, %82, %cst_29 [1] : vector<8x8xf32> to vector<8xf32>
    %84 = vector.shape_cast %83 : vector<8xf32> to vector<8x1xf32>
    %85 = vector.broadcast %84 : vector<8x1xf32> to vector<8x8xf32>
    %86 = arith.subf %82, %85 : vector<8x8xf32>
    %87 = math.exp %86 : vector<8x8xf32>
    %cst_30 = arith.constant dense<0.000000e+00> : vector<8xf32>
    %88 = vector.multi_reduction <add>, %87, %cst_30 [1] : vector<8x8xf32> to vector<8xf32>
    %89 = vector.shape_cast %88 : vector<8xf32> to vector<8x1xf32>
    %90 = tpu.reciprocal %89 {approx = true} : vector<8x1xf32> -> vector<8x1xf32>
    %91 = arith.mulf %89, %90 : vector<8x1xf32>
    %cst_31 = arith.constant 2.000000e+00 : f32
    %92 = vector.broadcast %cst_31 : f32 to vector<8x1xf32>
    %93 = arith.subf %92, %91 : vector<8x1xf32>
    %94 = arith.mulf %90, %93 : vector<8x1xf32>
    %95 = vector.broadcast %94 : vector<8x1xf32> to vector<8x8xf32>
    %96 = arith.mulf %87, %95 : vector<8x8xf32>
    %cst_32 = arith.constant dense<0.000000e+00> : vector<8x32xf32>
    %97 = tpu.matmul %96, %79, %cst_32 {dimension_numbers = #tpu.dot_dimension_numbers<[1], [0], [0], [1], [0, 0, 1, 1], [], []>} : vector<8x8xf32>, vector<8x32xf32>, vector<8x32xf32> -> vector<8x32xf32>
    %98 = arith.addf %67, %97 : vector<8x32xf32>
    %c16_i32_33 = arith.constant 16 : i32
    %99 = vector.broadcast %c16_i32_33 : i32 to vector<1x32xi32>
    %100 = arith.cmpi sge, %35, %99 : vector<1x32xi32>
    %c24_i32 = arith.constant 24 : i32
    %101 = vector.broadcast %c24_i32 : i32 to vector<1x32xi32>
    %102 = arith.cmpi slt, %35, %101 : vector<1x32xi32>
    %103 = arith.andi %100, %102 : vector<1x32xi1>
    %cst_34 = arith.constant 1.000000e+00 : f32
    %cst_35 = arith.constant 0.000000e+00 : f32
    %104 = vector.broadcast %cst_34 : f32 to vector<1x32xf32>
    %105 = vector.broadcast %cst_35 : f32 to vector<1x32xf32>
    %106 = arith.select %103, %104, %105 : vector<1x32xi1>, vector<1x32xf32>
    %107 = vector.broadcast %106 : vector<1x32xf32> to vector<8x32xf32>
    %108 = arith.mulf %31, %107 : vector<8x32xf32>
    %109 = vector.broadcast %106 : vector<1x32xf32> to vector<8x32xf32>
    %110 = arith.mulf %33, %109 : vector<8x32xf32>
    "tpu.trace_start"() <{level = 10 : i32, message = "qd,kd->qk"}> : () -> ()
    %cst_36 = arith.constant dense<0.000000e+00> : vector<8x8xf32>
    %111 = tpu.matmul %108, %32, %cst_36 {dimension_numbers = #tpu.dot_dimension_numbers<[1], [1], [0], [0], [0, 0, 1, 0], [], []>} : vector<8x32xf32>, vector<8x32xf32>, vector<8x8xf32> -> vector<8x8xf32>
    "tpu.trace_stop"() : () -> ()
    %112 = vector.broadcast %34 : f32 to vector<8x8xf32>
    %113 = arith.mulf %111, %112 : vector<8x8xf32>
    %cst_37 = arith.constant dense<0xFF800000> : vector<8xf32>
    %114 = vector.multi_reduction <maximumf>, %113, %cst_37 [1] : vector<8x8xf32> to vector<8xf32>
    %115 = vector.shape_cast %114 : vector<8xf32> to vector<8x1xf32>
    %116 = vector.broadcast %115 : vector<8x1xf32> to vector<8x8xf32>
    %117 = arith.subf %113, %116 : vector<8x8xf32>
    %118 = math.exp %117 : vector<8x8xf32>
    %cst_38 = arith.constant dense<0.000000e+00> : vector<8xf32>
    %119 = vector.multi_reduction <add>, %118, %cst_38 [1] : vector<8x8xf32> to vector<8xf32>
    %120 = vector.shape_cast %119 : vector<8xf32> to vector<8x1xf32>
    %121 = tpu.reciprocal %120 {approx = true} : vector<8x1xf32> -> vector<8x1xf32>
    %122 = arith.mulf %120, %121 : vector<8x1xf32>
    %cst_39 = arith.constant 2.000000e+00 : f32
    %123 = vector.broadcast %cst_39 : f32 to vector<8x1xf32>
    %124 = arith.subf %123, %122 : vector<8x1xf32>
    %125 = arith.mulf %121, %124 : vector<8x1xf32>
    %126 = vector.broadcast %125 : vector<8x1xf32> to vector<8x8xf32>
    %127 = arith.mulf %118, %126 : vector<8x8xf32>
    %cst_40 = arith.constant dense<0.000000e+00> : vector<8x32xf32>
    %128 = tpu.matmul %127, %110, %cst_40 {dimension_numbers = #tpu.dot_dimension_numbers<[1], [0], [0], [1], [0, 0, 1, 1], [], []>} : vector<8x8xf32>, vector<8x32xf32>, vector<8x32xf32> -> vector<8x32xf32>
    %129 = arith.addf %98, %128 : vector<8x32xf32>
    %c24_i32_41 = arith.constant 24 : i32
    %130 = vector.broadcast %c24_i32_41 : i32 to vector<1x32xi32>
    %131 = arith.cmpi sge, %35, %130 : vector<1x32xi32>
    %c32_i32 = arith.constant 32 : i32
    %132 = vector.broadcast %c32_i32 : i32 to vector<1x32xi32>
    %133 = arith.cmpi slt, %35, %132 : vector<1x32xi32>
    %134 = arith.andi %131, %133 : vector<1x32xi1>
    %cst_42 = arith.constant 1.000000e+00 : f32
    %cst_43 = arith.constant 0.000000e+00 : f32
    %135 = vector.broadcast %cst_42 : f32 to vector<1x32xf32>
    %136 = vector.broadcast %cst_43 : f32 to vector<1x32xf32>
    %137 = arith.select %134, %135, %136 : vector<1x32xi1>, vector<1x32xf32>
    %138 = vector.broadcast %137 : vector<1x32xf32> to vector<8x32xf32>
    %139 = arith.mulf %31, %138 : vector<8x32xf32>
    %140 = vector.broadcast %137 : vector<1x32xf32> to vector<8x32xf32>
    %141 = arith.mulf %33, %140 : vector<8x32xf32>
    "tpu.trace_start"() <{level = 10 : i32, message = "qd,kd->qk"}> : () -> ()
    %cst_44 = arith.constant dense<0.000000e+00> : vector<8x8xf32>
    %142 = tpu.matmul %139, %32, %cst_44 {dimension_numbers = #tpu.dot_dimension_numbers<[1], [1], [0], [0], [0, 0, 1, 0], [], []>} : vector<8x32xf32>, vector<8x32xf32>, vector<8x8xf32> -> vector<8x8xf32>
    "tpu.trace_stop"() : () -> ()
    %143 = vector.broadcast %34 : f32 to vector<8x8xf32>
    %144 = arith.mulf %142, %143 : vector<8x8xf32>
    %cst_45 = arith.constant dense<0xFF800000> : vector<8xf32>
    %145 = vector.multi_reduction <maximumf>, %144, %cst_45 [1] : vector<8x8xf32> to vector<8xf32>
    %146 = vector.shape_cast %145 : vector<8xf32> to vector<8x1xf32>
    %147 = vector.broadcast %146 : vector<8x1xf32> to vector<8x8xf32>
    %148 = arith.subf %144, %147 : vector<8x8xf32>
    %149 = math.exp %148 : vector<8x8xf32>
    %cst_46 = arith.constant dense<0.000000e+00> : vector<8xf32>
    %150 = vector.multi_reduction <add>, %149, %cst_46 [1] : vector<8x8xf32> to vector<8xf32>
    %151 = vector.shape_cast %150 : vector<8xf32> to vector<8x1xf32>
    %152 = tpu.reciprocal %151 {approx = true} : vector<8x1xf32> -> vector<8x1xf32>
    %153 = arith.mulf %151, %152 : vector<8x1xf32>
    %cst_47 = arith.constant 2.000000e+00 : f32
    %154 = vector.broadcast %cst_47 : f32 to vector<8x1xf32>
    %155 = arith.subf %154, %153 : vector<8x1xf32>
    %156 = arith.mulf %152, %155 : vector<8x1xf32>
    %157 = vector.broadcast %156 : vector<8x1xf32> to vector<8x8xf32>
    %158 = arith.mulf %149, %157 : vector<8x8xf32>
    %cst_48 = arith.constant dense<0.000000e+00> : vector<8x32xf32>
    %159 = tpu.matmul %158, %141, %cst_48 {dimension_numbers = #tpu.dot_dimension_numbers<[1], [0], [0], [1], [0, 0, 1, 1], [], []>} : vector<8x8xf32>, vector<8x32xf32>, vector<8x32xf32> -> vector<8x32xf32>
    %160 = arith.addf %129, %159 : vector<8x32xf32>
    %c0_49 = arith.constant 0 : index
    %c0_50 = arith.constant 0 : index
    %161 = vector.load %arg6[%c0_49, %c0_50] : memref<32x32xf32, #tpu.memory_space<vmem>>, vector<32x32xf32>
    %cst_51 = arith.constant dense<0.000000e+00> : vector<8x32xf32>
    %162 = tpu.matmul %160, %161, %cst_51 {dimension_numbers = #tpu.dot_dimension_numbers<[1], [0], [0], [1], [0, 0, 1, 1], [], []>} : vector<8x32xf32>, vector<32x32xf32>, vector<8x32xf32> -> vector<8x32xf32>
    %c0_52 = arith.constant 0 : index
    %c0_53 = arith.constant 0 : index
    %163 = vector.load %arg7[%c0_52, %c0_53] : memref<1x32xf32, #tpu.memory_space<vmem>>, vector<1x32xf32>
    %164 = vector.broadcast %163 : vector<1x32xf32> to vector<8x32xf32>
    %165 = arith.addf %162, %164 : vector<8x32xf32>
    %166 = arith.addf %1, %165 : vector<8x32xf32>
    %c0_54 = arith.constant 0 : index
    %c0_55 = arith.constant 0 : index
    %167 = vector.load %arg8[%c0_54, %c0_55] : memref<1x32xf32, #tpu.memory_space<vmem>>, vector<1x32xf32>
    %c0_56 = arith.constant 0 : index
    %c0_57 = arith.constant 0 : index
    %168 = vector.load %arg9[%c0_56, %c0_57] : memref<1x32xf32, #tpu.memory_space<vmem>>, vector<1x32xf32>
    %cst_58 = arith.constant dense<0.000000e+00> : vector<8xf32>
    %169 = vector.multi_reduction <add>, %166, %cst_58 [1] : vector<8x32xf32> to vector<8xf32>
    %170 = vector.shape_cast %169 : vector<8xf32> to vector<8x1xf32>
    %cst_59 = arith.constant 3.200000e+01 : f32
    %171 = vector.broadcast %cst_59 : f32 to vector<8x1xf32>
    %172 = arith.divf %170, %171 : vector<8x1xf32>
    %173 = vector.broadcast %172 : vector<8x1xf32> to vector<8x32xf32>
    %174 = arith.subf %166, %173 : vector<8x32xf32>
    %175 = arith.mulf %174, %174 : vector<8x32xf32>
    %cst_60 = arith.constant dense<0.000000e+00> : vector<8xf32>
    %176 = vector.multi_reduction <add>, %175, %cst_60 [1] : vector<8x32xf32> to vector<8xf32>
    %177 = vector.shape_cast %176 : vector<8xf32> to vector<8x1xf32>
    %cst_61 = arith.constant 3.200000e+01 : f32
    %178 = vector.broadcast %cst_61 : f32 to vector<8x1xf32>
    %179 = arith.divf %177, %178 : vector<8x1xf32>
    %cst_62 = arith.constant 9.99999974E-6 : f32
    %180 = vector.broadcast %cst_62 : f32 to vector<8x1xf32>
    %181 = arith.addf %179, %180 : vector<8x1xf32>
    %182 = math.rsqrt %181 : vector<8x1xf32>
    %183 = vector.broadcast %172 : vector<8x1xf32> to vector<8x32xf32>
    %184 = arith.subf %166, %183 : vector<8x32xf32>
    %185 = vector.broadcast %182 : vector<8x1xf32> to vector<8x32xf32>
    %186 = arith.mulf %184, %185 : vector<8x32xf32>
    %187 = vector.broadcast %167 : vector<1x32xf32> to vector<8x32xf32>
    %188 = arith.mulf %186, %187 : vector<8x32xf32>
    %189 = vector.broadcast %168 : vector<1x32xf32> to vector<8x32xf32>
    %190 = arith.addf %188, %189 : vector<8x32xf32>
    %c0_63 = arith.constant 0 : index
    %c0_64 = arith.constant 0 : index
    %191 = vector.load %arg10[%c0_63, %c0_64] : memref<32x128xf32, #tpu.memory_space<vmem>>, vector<32x128xf32>
    %cst_65 = arith.constant dense<0.000000e+00> : vector<8x128xf32>
    %192 = tpu.matmul %190, %191, %cst_65 {dimension_numbers = #tpu.dot_dimension_numbers<[1], [0], [0], [1], [0, 0, 1, 1], [], []>} : vector<8x32xf32>, vector<32x128xf32>, vector<8x128xf32> -> vector<8x128xf32>
    %c0_66 = arith.constant 0 : index
    %c0_67 = arith.constant 0 : index
    %193 = vector.load %arg11[%c0_66, %c0_67] : memref<1x128xf32, #tpu.memory_space<vmem>>, vector<1x128xf32>
    %194 = vector.broadcast %193 : vector<1x128xf32> to vector<8x128xf32>
    %195 = arith.addf %192, %194 : vector<8x128xf32>
    %cst_68 = arith.constant 5.000000e-01 : f32
    %196 = vector.broadcast %cst_68 : f32 to vector<8x128xf32>
    %197 = arith.mulf %196, %195 : vector<8x128xf32>
    %cst_69 = arith.constant 2.000000e+00 : f32
    %198 = math.sqrt %cst_69 : f32
    %199 = vector.broadcast %198 : f32 to vector<8x128xf32>
    %200 = arith.divf %195, %199 : vector<8x128xf32>
    %201 = math.erf %200 : vector<8x128xf32>
    %cst_70 = arith.constant 1.000000e+00 : f32
    %202 = vector.broadcast %cst_70 : f32 to vector<8x128xf32>
    %203 = arith.addf %202, %201 : vector<8x128xf32>
    %204 = arith.mulf %197, %203 : vector<8x128xf32>
    %c0_71 = arith.constant 0 : index
    %c0_72 = arith.constant 0 : index
    %205 = vector.load %arg12[%c0_71, %c0_72] : memref<128x32xf32, #tpu.memory_space<vmem>>, vector<128x32xf32>
    %cst_73 = arith.constant dense<0.000000e+00> : vector<8x32xf32>
    %206 = tpu.matmul %204, %205, %cst_73 {dimension_numbers = #tpu.dot_dimension_numbers<[1], [0], [0], [1], [0, 0, 1, 1], [], []>} : vector<8x128xf32>, vector<128x32xf32>, vector<8x32xf32> -> vector<8x32xf32>
    %c0_74 = arith.constant 0 : index
    %c0_75 = arith.constant 0 : index
    %207 = vector.load %arg13[%c0_74, %c0_75] : memref<1x32xf32, #tpu.memory_space<vmem>>, vector<1x32xf32>
    %208 = vector.broadcast %207 : vector<1x32xf32> to vector<8x32xf32>
    %209 = arith.addf %206, %208 : vector<8x32xf32>
    %210 = arith.addf %166, %209 : vector<8x32xf32>
    %c0_76 = arith.constant 0 : index
    %c0_77 = arith.constant 0 : index
    %c0_78 = arith.constant 0 : index
    %211 = vector.load %arg14[%c0_76, %c0_77, %c0_78] : memref<1x8x32xf32, #tpu.memory_space<vmem>>, vector<1x8x32xf32>
    %212 = vector.shape_cast %211 : vector<1x8x32xf32> to vector<8x32xf32>
    %213 = vector.shape_cast %210 : vector<8x32xf32> to vector<1x8x32xf32>
    tpu.vector_store %arg14[%c0_76, %c0_77, %c0_78], %213 {strides = array<i32>} : memref<1x8x32xf32, #tpu.memory_space<vmem>>, vector<1x8x32xf32>,
    return
  }
  func.func @transform_0(%arg0: i32) -> (i32, i32, i32) {
    %c0_i32 = arith.constant 0 : i32
    %c0_i32_0 = arith.constant 0 : i32
    %c0_i32_1 = arith.constant 0 : i32
    return %arg0, %c0_i32, %c0_i32_0 : i32, i32, i32
  }
  func.func @transform_1(%arg0: i32) -> (i32, i32) {
    %c0_i32 = arith.constant 0 : i32
    %c0_i32_0 = arith.constant 0 : i32
    %c0_i32_1 = arith.constant 0 : i32
    return %c0_i32, %c0_i32_0 : i32, i32
  }
  func.func @transform_2(%arg0: i32) -> (i32, i32) {
    %c0_i32 = arith.constant 0 : i32
    %c0_i32_0 = arith.constant 0 : i32
    %c0_i32_1 = arith.constant 0 : i32
    return %c0_i32, %c0_i32_0 : i32, i32
  }
  func.func @transform_3(%arg0: i32) -> (i32, i32) {
    %c0_i32 = arith.constant 0 : i32
    %c0_i32_0 = arith.constant 0 : i32
    %c0_i32_1 = arith.constant 0 : i32
    return %c0_i32, %c0_i32_0 : i32, i32
  }
  func.func @transform_4(%arg0: i32) -> (i32, i32) {
    %c0_i32 = arith.constant 0 : i32
    %c0_i32_0 = arith.constant 0 : i32
    %c0_i32_1 = arith.constant 0 : i32
    return %c0_i32, %c0_i32_0 : i32, i32
  }
  func.func @transform_5(%arg0: i32) -> (i32, i32) {
    %c0_i32 = arith.constant 0 : i32
    %c0_i32_0 = arith.constant 0 : i32
    %c0_i32_1 = arith.constant 0 : i32
    return %c0_i32, %c0_i32_0 : i32, i32
  }
  func.func @transform_6(%arg0: i32) -> (i32, i32) {
    %c0_i32 = arith.constant 0 : i32
    %c0_i32_0 = arith.constant 0 : i32
    %c0_i32_1 = arith.constant 0 : i32
    return %c0_i32, %c0_i32_0 : i32, i32
  }
  func.func @transform_7(%arg0: i32) -> (i32, i32) {
    %c0_i32 = arith.constant 0 : i32
    %c0_i32_0 = arith.constant 0 : i32
    %c0_i32_1 = arith.constant 0 : i32
    return %c0_i32, %c0_i32_0 : i32, i32
  }
  func.func @transform_8(%arg0: i32) -> (i32, i32) {
    %c0_i32 = arith.constant 0 : i32
    %c0_i32_0 = arith.constant 0 : i32
    %c0_i32_1 = arith.constant 0 : i32
    return %c0_i32, %c0_i32_0 : i32, i32
  }
  func.func @transform_9(%arg0: i32) -> (i32, i32) {
    %c0_i32 = arith.constant 0 : i32
    %c0_i32_0 = arith.constant 0 : i32
    %c0_i32_1 = arith.constant 0 : i32
    return %c0_i32, %c0_i32_0 : i32, i32
  }
  func.func @transform_10(%arg0: i32) -> (i32, i32) {
    %c0_i32 = arith.constant 0 : i32
    %c0_i32_0 = arith.constant 0 : i32
    %c0_i32_1 = arith.constant 0 : i32
    return %c0_i32, %c0_i32_0 : i32, i32
  }
  func.func @transform_11(%arg0: i32) -> (i32, i32) {
    %c0_i32 = arith.constant 0 : i32
    %c0_i32_0 = arith.constant 0 : i32
    %c0_i32_1 = arith.constant 0 : i32
    return %c0_i32, %c0_i32_0 : i32, i32
  }
  func.func @transform_12(%arg0: i32) -> (i32, i32) {
    %c0_i32 = arith.constant 0 : i32
    %c0_i32_0 = arith.constant 0 : i32
    %c0_i32_1 = arith.constant 0 : i32
    return %c0_i32, %c0_i32_0 : i32, i32
  }
  func.func @transform_13(%arg0: i32) -> (i32, i32, i32) {
    %c0_i32 = arith.constant 0 : i32
    %c0_i32_0 = arith.constant 0 : i32
    %c0_i32_1 = arith.constant 0 : i32
    return %arg0, %c0_i32, %c0_i32_0 : i32, i32, i32
  }
}

</mosaic_0001>

<llo_original>
// kernel: transformer_encoder.1
$region0: #{transformer_encoder.1}
  #allocation0 [shape = 'u32[]', space=smem, size = 0x4, offset = 0x4, fixed_abs, tag = 'smem constant byte address 0x4 - core index']
  #allocation1 [shape = 'u32[72,128]{1,0:T(1,128)}', space=vmem, size = 0x9000, scoped, tag = 'internal scratch']
  %s0 = inlined_call_operand.vmem [shape: f32[2,8,32], index: 0, kind: input, shape index: {}]
  %s1 = inlined_call_operand.vmem [shape: f32[1,32], index: 1, kind: input, shape index: {}]
  %s2 = inlined_call_operand.vmem [shape: f32[1,32], index: 2, kind: input, shape index: {}]
  %s3 = inlined_call_operand.vmem [shape: f32[32,96], index: 3, kind: input, shape index: {}]
  %s4 = inlined_call_operand.vmem [shape: f32[1,96], index: 4, kind: input, shape index: {}]
  %s5 = inlined_call_operand.vmem [shape: f32[32,32], index: 5, kind: input, shape index: {}]
  %s6 = inlined_call_operand.vmem [shape: f32[1,32], index: 6, kind: input, shape index: {}]
  %s7 = inlined_call_operand.vmem [shape: f32[1,32], index: 7, kind: input, shape index: {}]
  %s8 = inlined_call_operand.vmem [shape: f32[1,32], index: 8, kind: input, shape index: {}]
  %s9 = inlined_call_operand.vmem [shape: f32[32,128], index: 9, kind: input, shape index: {}]
  %s10 = inlined_call_operand.vmem [shape: f32[1,128], index: 10, kind: input, shape index: {}]
  %s11 = inlined_call_operand.vmem [shape: f32[128,32], index: 11, kind: input, shape index: {}]
  %s12 = inlined_call_operand.vmem [shape: f32[1,32], index: 12, kind: input, shape index: {}]
  %s13 = inlined_call_operand.hbm [shape: f32[2,8,32], index: 13, kind: output, shape index: {}]
  %s14 = sld [smem:[#allocation0]]
  $region85: #{transformer_encoder.1} parent=0
    _
  %s16 = ssub.s32 1, %s14
  %s17 = scalar_select 0, %s16, %s14
  $region1: #{transformer_encoder.1} parent=0
    #allocation2 [shape = 'u8[8192]{0}', space=vmem, size = 0x2000, scoped, tag = 'output window, operand 0']
    #allocation3 [shape = 's32[2]{0}', space=sflag, size = 0x8, scoped, tag = 'scoped memory for transformer_encoder.1']
    %18 = vsyncpa [#allocation3], 0
    %s19 = scalar_lea.sflag [#allocation3], 1
    %20 = vsyncpa %s19, 0
    loop: start=0, step=1, limit=4
    $region2: #{transformer_encoder.1} parent=1 // loop_pre_header
      _
    $region3: #{transformer_encoder.1} parent=1 // loop_header
      %s22 = sphi 0, %s26
      %p23 = scmp.ge.s32.totalorder %s22, 4
      %s32 = sphi 0, %s34
      %s35 = sphi 0, %s32
      %s36 = sphi 0, %s35
      %s52 = sphi 0, %s36
      %s56 = sphi 0, %s56
      %s58 = sphi 0, %s56
      %s59 = sphi 0, %s58
      %s73 = sphi 0, %s59
      %s77 = sphi 0, %s77
      %s79 = sphi 0, %s77
      %s80 = sphi 0, %s79
      %s94 = sphi 0, %s80
      %s98 = sphi 0, %s98
      %s100 = sphi 0, %s98
      %s101 = sphi 0, %s100
      %s115 = sphi 0, %s101
      %s119 = sphi 0, %s119
      %s121 = sphi 0, %s119
      %s122 = sphi 0, %s121
      %s136 = sphi 0, %s122
      %s140 = sphi 0, %s140
      %s142 = sphi 0, %s140
      %s143 = sphi 0, %s142
      %s157 = sphi 0, %s143
      %s161 = sphi 0, %s161
      %s163 = sphi 0, %s161
      %s164 = sphi 0, %s163
      %s178 = sphi 0, %s164
      %s182 = sphi 0, %s182
      %s184 = sphi 0, %s182
      %s185 = sphi 0, %s184
      %s199 = sphi 0, %s185
      %s203 = sphi 0, %s203
      %s205 = sphi 0, %s203
      %s206 = sphi 0, %s205
      %s220 = sphi 0, %s206
      %s224 = sphi 0, %s224
      %s226 = sphi 0, %s224
      %s227 = sphi 0, %s226
      %s241 = sphi 0, %s227
      %s245 = sphi 0, %s245
      %s247 = sphi 0, %s245
      %s248 = sphi 0, %s247
      %s262 = sphi 0, %s248
      %s266 = sphi 0, %s266
      %s268 = sphi 0, %s266
      %s269 = sphi 0, %s268
      %s283 = sphi 0, %s269
      %s287 = sphi 0, %s287
      %s289 = sphi 0, %s287
      %s290 = sphi 0, %s289
      %s304 = sphi 0, %s290
      %s310 = sphi 0, %s312
      %s313 = sphi 0, %s310
      %s314 = sphi 0, %s313
      %s330 = sphi 0, %s314
    $region4: #{transformer_encoder.1} parent=1 // loop_header_branch
      %25 = sbr.rel (%p23) target = $region8
    $region5: #{transformer_encoder.1} parent=1 // loop_body
      %s27 = ssub.s32 %s22, 1
      %s28 = ssub.s32 %s22, 2
      %s29 = sadd.s32 %s22, 1
      %s30 = ssub.s32 %s22, %s29
      %p31 = scmp.eq.s32.totalorder %s30, 0
      %s33 = sadd.s32 %s32, 1
      %s34 = scalar_select %p31, %s32, %s33
      %p37 = pneg %p31
      %p38 = scmp.eq.s32.totalorder %s22, 1
      %p39 = por %p37, %p38
      %p40 = scmp.ne.s32.totalorder %s32, %s35
      %p41 = scmp.eq.s32.totalorder %s22, 0
      %p42 = por %p40, %p41
      %p43 = scmp.ne.s32.totalorder %s32, %s35
      %p44 = scmp.eq.s32.totalorder %s27, 1
      %p45 = por %p43, %p44
      %p46 = scmp.ne.s32.totalorder %s35, %s36
      %p47 = scmp.eq.s32.totalorder %s27, 0
      %p48 = por %p46, %p47
      %p49 = scmp.ne.s32.totalorder %s35, %s36
      %p50 = scmp.eq.s32.totalorder %s28, 1
      %p51 = por %p49, %p50
      %p53 = scmp.ne.s32.totalorder %s36, %s52
      %p54 = scmp.eq.s32.totalorder %s28, 0
      %p55 = por %p53, %p54
      %s57 = sadd.s32 %s56, 1
      %p60 = scmp.eq.s32.totalorder %s22, 1
      %p61 = scmp.ne.s32.totalorder %s56, %s58
      %p62 = scmp.eq.s32.totalorder %s22, 0
      %p63 = por %p61, %p62
      %p64 = scmp.ne.s32.totalorder %s56, %s58
      %p65 = scmp.eq.s32.totalorder %s27, 1
      %p66 = por %p64, %p65
      %p67 = scmp.ne.s32.totalorder %s58, %s59
      %p68 = scmp.eq.s32.totalorder %s27, 0
      %p69 = por %p67, %p68
      %p70 = scmp.ne.s32.totalorder %s58, %s59
      %p71 = scmp.eq.s32.totalorder %s28, 1
      %p72 = por %p70, %p71
      %p74 = scmp.ne.s32.totalorder %s59, %s73
      %p75 = scmp.eq.s32.totalorder %s28, 0
      %p76 = por %p74, %p75
      %s78 = sadd.s32 %s77, 1
      %p81 = scmp.eq.s32.totalorder %s22, 1
      %p82 = scmp.ne.s32.totalorder %s77, %s79
      %p83 = scmp.eq.s32.totalorder %s22, 0
      %p84 = por %p82, %p83
      %p85 = scmp.ne.s32.totalorder %s77, %s79
      %p86 = scmp.eq.s32.totalorder %s27, 1
      %p87 = por %p85, %p86
      %p88 = scmp.ne.s32.totalorder %s79, %s80
      %p89 = scmp.eq.s32.totalorder %s27, 0
      %p90 = por %p88, %p89
      %p91 = scmp.ne.s32.totalorder %s79, %s80
      %p92 = scmp.eq.s32.totalorder %s28, 1
      %p93 = por %p91, %p92
      %p95 = scmp.ne.s32.totalorder %s80, %s94
      %p96 = scmp.eq.s32.totalorder %s28, 0
      %p97 = por %p95, %p96
      %s99 = sadd.s32 %s98, 1
      %p102 = scmp.eq.s32.totalorder %s22, 1
      %p103 = scmp.ne.s32.totalorder %s98, %s100
      %p104 = scmp.eq.s32.totalorder %s22, 0
      %p105 = por %p103, %p104
      %p106 = scmp.ne.s32.totalorder %s98, %s100
      %p107 = scmp.eq.s32.totalorder %s27, 1
      %p108 = por %p106, %p107
      %p109 = scmp.ne.s32.totalorder %s100, %s101
      %p110 = scmp.eq.s32.totalorder %s27, 0
      %p111 = por %p109, %p110
      %p112 = scmp.ne.s32.totalorder %s100, %s101
      %p113 = scmp.eq.s32.totalorder %s28, 1
      %p114 = por %p112, %p113
      %p116 = scmp.ne.s32.totalorder %s101, %s115
      %p117 = scmp.eq.s32.totalorder %s28, 0
      %p118 = por %p116, %p117
      %s120 = sadd.s32 %s119, 1
      %p123 = scmp.eq.s32.totalorder %s22, 1
      %p124 = scmp.ne.s32.totalorder %s119, %s121
      %p125 = scmp.eq.s32.totalorder %s22, 0
      %p126 = por %p124, %p125
      %p127 = scmp.ne.s32.totalorder %s119, %s121
      %p128 = scmp.eq.s32.totalorder %s27, 1
      %p129 = por %p127, %p128
      %p130 = scmp.ne.s32.totalorder %s121, %s122
      %p131 = scmp.eq.s32.totalorder %s27, 0
      %p132 = por %p130, %p131
      %p133 = scmp.ne.s32.totalorder %s121, %s122
      %p134 = scmp.eq.s32.totalorder %s28, 1
      %p135 = por %p133, %p134
      %p137 = scmp.ne.s32.totalorder %s122, %s136
      %p138 = scmp.eq.s32.totalorder %s28, 0
      %p139 = por %p137, %p138
      %s141 = sadd.s32 %s140, 1
      %p144 = scmp.eq.s32.totalorder %s22, 1
      %p145 = scmp.ne.s32.totalorder %s140, %s142
      %p146 = scmp.eq.s32.totalorder %s22, 0
      %p147 = por %p145, %p146
      %p148 = scmp.ne.s32.totalorder %s140, %s142
      %p149 = scmp.eq.s32.totalorder %s27, 1
      %p150 = por %p148, %p149
      %p151 = scmp.ne.s32.totalorder %s142, %s143
      %p152 = scmp.eq.s32.totalorder %s27, 0
      %p153 = por %p151, %p152
      %p154 = scmp.ne.s32.totalorder %s142, %s143
      %p155 = scmp.eq.s32.totalorder %s28, 1
      %p156 = por %p154, %p155
      %p158 = scmp.ne.s32.totalorder %s143, %s157
      %p159 = scmp.eq.s32.totalorder %s28, 0
      %p160 = por %p158, %p159
      %s162 = sadd.s32 %s161, 1
      %p165 = scmp.eq.s32.totalorder %s22, 1
      %p166 = scmp.ne.s32.totalorder %s161, %s163
      %p167 = scmp.eq.s32.totalorder %s22, 0
      %p168 = por %p166, %p167
      %p169 = scmp.ne.s32.totalorder %s161, %s163
      %p170 = scmp.eq.s32.totalorder %s27, 1
      %p171 = por %p169, %p170
      %p172 = scmp.ne.s32.totalorder %s163, %s164
      %p173 = scmp.eq.s32.totalorder %s27, 0
      %p174 = por %p172, %p173
      %p175 = scmp.ne.s32.totalorder %s163, %s164
      %p176 = scmp.eq.s32.totalorder %s28, 1
      %p177 = por %p175, %p176
      %p179 = scmp.ne.s32.totalorder %s164, %s178
      %p180 = scmp.eq.s32.totalorder %s28, 0
      %p181 = por %p179, %p180
      %s183 = sadd.s32 %s182, 1
      %p186 = scmp.eq.s32.totalorder %s22, 1
      %p187 = scmp.ne.s32.totalorder %s182, %s184
      %p188 = scmp.eq.s32.totalorder %s22, 0
      %p189 = por %p187, %p188
      %p190 = scmp.ne.s32.totalorder %s182, %s184
      %p191 = scmp.eq.s32.totalorder %s27, 1
      %p192 = por %p190, %p191
      %p193 = scmp.ne.s32.totalorder %s184, %s185
      %p194 = scmp.eq.s32.totalorder %s27, 0
      %p195 = por %p193, %p194
      %p196 = scmp.ne.s32.totalorder %s184, %s185
      %p197 = scmp.eq.s32.totalorder %s28, 1
      %p198 = por %p196, %p197
      %p200 = scmp.ne.s32.totalorder %s185, %s199
      %p201 = scmp.eq.s32.totalorder %s28, 0
      %p202 = por %p200, %p201
      %s204 = sadd.s32 %s203, 1
      %p207 = scmp.eq.s32.totalorder %s22, 1
      %p208 = scmp.ne.s32.totalorder %s203, %s205
      %p209 = scmp.eq.s32.totalorder %s22, 0
      %p210 = por %p208, %p209
      %p211 = scmp.ne.s32.totalorder %s203, %s205
      %p212 = scmp.eq.s32.totalorder %s27, 1
      %p213 = por %p211, %p212
      %p214 = scmp.ne.s32.totalorder %s205, %s206
      %p215 = scmp.eq.s32.totalorder %s27, 0
      %p216 = por %p214, %p215
      %p217 = scmp.ne.s32.totalorder %s205, %s206
      %p218 = scmp.eq.s32.totalorder %s28, 1
      %p219 = por %p217, %p218
      %p221 = scmp.ne.s32.totalorder %s206, %s220
      %p222 = scmp.eq.s32.totalorder %s28, 0
      %p223 = por %p221, %p222
      %s225 = sadd.s32 %s224, 1
      %p228 = scmp.eq.s32.totalorder %s22, 1
      %p229 = scmp.ne.s32.totalorder %s224, %s226
      %p230 = scmp.eq.s32.totalorder %s22, 0
      %p231 = por %p229, %p230
      %p232 = scmp.ne.s32.totalorder %s224, %s226
      %p233 = scmp.eq.s32.totalorder %s27, 1
      %p234 = por %p232, %p233
      %p235 = scmp.ne.s32.totalorder %s226, %s227
      %p236 = scmp.eq.s32.totalorder %s27, 0
      %p237 = por %p235, %p236
      %p238 = scmp.ne.s32.totalorder %s226, %s227
      %p239 = scmp.eq.s32.totalorder %s28, 1
      %p240 = por %p238, %p239
      %p242 = scmp.ne.s32.totalorder %s227, %s241
      %p243 = scmp.eq.s32.totalorder %s28, 0
      %p244 = por %p242, %p243
      %s246 = sadd.s32 %s245, 1
      %p249 = scmp.eq.s32.totalorder %s22, 1
      %p250 = scmp.ne.s32.totalorder %s245, %s247
      %p251 = scmp.eq.s32.totalorder %s22, 0
      %p252 = por %p250, %p251
      %p253 = scmp.ne.s32.totalorder %s245, %s247
      %p254 = scmp.eq.s32.totalorder %s27, 1
      %p255 = por %p253, %p254
      %p256 = scmp.ne.s32.totalorder %s247, %s248
      %p257 = scmp.eq.s32.totalorder %s27, 0
      %p258 = por %p256, %p257
      %p259 = scmp.ne.s32.totalorder %s247, %s248
      %p260 = scmp.eq.s32.totalorder %s28, 1
      %p261 = por %p259, %p260
      %p263 = scmp.ne.s32.totalorder %s248, %s262
      %p264 = scmp.eq.s32.totalorder %s28, 0
      %p265 = por %p263, %p264
      %s267 = sadd.s32 %s266, 1
      %p270 = scmp.eq.s32.totalorder %s22, 1
      %p271 = scmp.ne.s32.totalorder %s266, %s268
      %p272 = scmp.eq.s32.totalorder %s22, 0
      %p273 = por %p271, %p272
      %p274 = scmp.ne.s32.totalorder %s266, %s268
      %p275 = scmp.eq.s32.totalorder %s27, 1
      %p276 = por %p274, %p275
      %p277 = scmp.ne.s32.totalorder %s268, %s269
      %p278 = scmp.eq.s32.totalorder %s27, 0
      %p279 = por %p277, %p278
      %p280 = scmp.ne.s32.totalorder %s268, %s269
      %p281 = scmp.eq.s32.totalorder %s28, 1
      %p282 = por %p280, %p281
      %p284 = scmp.ne.s32.totalorder %s269, %s283
      %p285 = scmp.eq.s32.totalorder %s28, 0
      %p286 = por %p284, %p285
      %s288 = sadd.s32 %s287, 1
      %p291 = scmp.eq.s32.totalorder %s22, 1
      %p292 = scmp.ne.s32.totalorder %s287, %s289
      %p293 = scmp.eq.s32.totalorder %s22, 0
      %p294 = por %p292, %p293
      %p295 = scmp.ne.s32.totalorder %s287, %s289
      %p296 = scmp.eq.s32.totalorder %s27, 1
      %p297 = por %p295, %p296
      %p298 = scmp.ne.s32.totalorder %s289, %s290
      %p299 = scmp.eq.s32.totalorder %s27, 0
      %p300 = por %p298, %p299
      %p301 = scmp.ne.s32.totalorder %s289, %s290
      %p302 = scmp.eq.s32.totalorder %s28, 1
      %p303 = por %p301, %p302
      %p305 = scmp.ne.s32.totalorder %s290, %s304
      %p306 = scmp.eq.s32.totalorder %s28, 0
      %p307 = por %p305, %p306
      %s308 = ssub.s32 %s22, %s29
      %p309 = scmp.eq.s32.totalorder %s308, 0
      %s311 = sadd.s32 %s310, 1
      %s312 = scalar_select %p309, %s310, %s311
      %p315 = pneg %p309
      %p316 = scmp.eq.s32.totalorder %s22, 1
      %p317 = por %p315, %p316
      %p318 = scmp.ne.s32.totalorder %s310, %s313
      %p319 = scmp.eq.s32.totalorder %s22, 0
      %p320 = por %p318, %p319
      %p321 = scmp.ne.s32.totalorder %s310, %s313
      %p322 = scmp.eq.s32.totalorder %s27, 1
      %p323 = por %p321, %p322
      %p324 = scmp.ne.s32.totalorder %s313, %s314
      %p325 = scmp.eq.s32.totalorder %s27, 0
      %p326 = por %p324, %p325
      %p327 = scmp.ne.s32.totalorder %s313, %s314
      %p328 = scmp.eq.s32.totalorder %s28, 1
      %p329 = por %p327, %p328
      %p331 = scmp.ne.s32.totalorder %s314, %s330
      %p332 = scmp.eq.s32.totalorder %s28, 0
      %p333 = por %p331, %p332
      %p334 = scmp.le.s32.totalorder 1, %s22
      %p335 = scmp.lt.s32.totalorder %s22, 3
      %p336 = pnand %p334, %p335
      %p337 = pneg %p336
      // Predicated region
      $region9: #{transformer_encoder.1} parent=5 // pred_check
        _
      $region10: #{transformer_encoder.1} parent=5 // pred_check_branch
        %339 = sbr.rel (%p336) target = $region12
      $region11: #{transformer_encoder.1} parent=5 // pred_region
        %s340 = ssub.s32 %s22, 1
        // Predicated region
        $region13: #{transformer_encoder.1} parent=11 // pred_check
          %p341 = pneg %p69
        $region14: #{transformer_encoder.1} parent=11 // pred_check_branch
          %343 = sbr.rel (%p341) target = $region16
        $region15: #{transformer_encoder.1} parent=11 // pred_region
          _
        $region16: #{transformer_encoder.1} parent=11 // pred_fallthru
          _
        // Predicated region
        $region17: #{transformer_encoder.1} parent=11 // pred_check
          %p344 = pneg %p90
        $region18: #{transformer_encoder.1} parent=11 // pred_check_branch
          %346 = sbr.rel (%p344) target = $region20
        $region19: #{transformer_encoder.1} parent=11 // pred_region
          _
        $region20: #{transformer_encoder.1} parent=11 // pred_fallthru
          _
        // Predicated region
        $region21: #{transformer_encoder.1} parent=11 // pred_check
          %p347 = pneg %p111
        $region22: #{transformer_encoder.1} parent=11 // pred_check_branch
          %349 = sbr.rel (%p347) target = $region24
        $region23: #{transformer_encoder.1} parent=11 // pred_region
          _
        $region24: #{transformer_encoder.1} parent=11 // pred_fallthru
          _
        // Predicated region
        $region25: #{transformer_encoder.1} parent=11 // pred_check
          %p350 = pneg %p132
        $region26: #{transformer_encoder.1} parent=11 // pred_check_branch
          %352 = sbr.rel (%p350) target = $region28
        $region27: #{transformer_encoder.1} parent=11 // pred_region
          _
        $region28: #{transformer_encoder.1} parent=11 // pred_fallthru
          _
        // Predicated region
        $region29: #{transformer_encoder.1} parent=11 // pred_check
          %p353 = pneg %p153
        $region30: #{transformer_encoder.1} parent=11 // pred_check_branch
          %355 = sbr.rel (%p353) target = $region32
        $region31: #{transformer_encoder.1} parent=11 // pred_region
          _
        $region32: #{transformer_encoder.1} parent=11 // pred_fallthru
          _
        // Predicated region
        $region33: #{transformer_encoder.1} parent=11 // pred_check
          %p356 = pneg %p174
        $region34: #{transformer_encoder.1} parent=11 // pred_check_branch
          %358 = sbr.rel (%p356) target = $region36
        $region35: #{transformer_encoder.1} parent=11 // pred_region
          _
        $region36: #{transformer_encoder.1} parent=11 // pred_fallthru
          _
        // Predicated region
        $region37: #{transformer_encoder.1} parent=11 // pred_check
          %p359 = pneg %p195
        $region38: #{transformer_encoder.1} parent=11 // pred_check_branch
          %361 = sbr.rel (%p359) target = $region40
        $region39: #{transformer_encoder.1} parent=11 // pred_region
          _
        $region40: #{transformer_encoder.1} parent=11 // pred_fallthru
          _
        // Predicated region
        $region41: #{transformer_encoder.1} parent=11 // pred_check
          %p362 = pneg %p216
        $region42: #{transformer_encoder.1} parent=11 // pred_check_branch
          %364 = sbr.rel (%p362) target = $region44
        $region43: #{transformer_encoder.1} parent=11 // pred_region
          _
        $region44: #{transformer_encoder.1} parent=11 // pred_fallthru
          _
        // Predicated region
        $region45: #{transformer_encoder.1} parent=11 // pred_check
          %p365 = pneg %p237
        $region46: #{transformer_encoder.1} parent=11 // pred_check_branch
          %367 = sbr.rel (%p365) target = $region48
        $region47: #{transformer_encoder.1} parent=11 // pred_region
          _
        $region48: #{transformer_encoder.1} parent=11 // pred_fallthru
          _
        // Predicated region
        $region49: #{transformer_encoder.1} parent=11 // pred_check
          %p368 = pneg %p258
        $region50: #{transformer_encoder.1} parent=11 // pred_check_branch
          %370 = sbr.rel (%p368) target = $region52
        $region51: #{transformer_encoder.1} parent=11 // pred_region
          _
        $region52: #{transformer_encoder.1} parent=11 // pred_fallthru
          _
        // Predicated region
        $region53: #{transformer_encoder.1} parent=11 // pred_check
          %p371 = pneg %p279
        $region54: #{transformer_encoder.1} parent=11 // pred_check_branch
          %373 = sbr.rel (%p371) target = $region56
        $region55: #{transformer_encoder.1} parent=11 // pred_region
          _
        $region56: #{transformer_encoder.1} parent=11 // pred_fallthru
          _
        // Predicated region
        $region57: #{transformer_encoder.1} parent=11 // pred_check
          %p374 = pneg %p300
        $region58: #{transformer_encoder.1} parent=11 // pred_check_branch
          %376 = sbr.rel (%p374) target = $region60
        $region59: #{transformer_encoder.1} parent=11 // pred_region
          _
        $region60: #{transformer_encoder.1} parent=11 // pred_fallthru
          _
      $region12: #{transformer_encoder.1} parent=5 // pred_fallthru
        _
      %p377 = scmp.lt.s32.totalorder %s22, 2
      // Predicated region
      $region61: #{transformer_encoder.1} parent=5 // pred_check
        %p378 = pneg %p377
      $region62: #{transformer_encoder.1} parent=5 // pred_check_branch
        %380 = sbr.rel (%p378) target = $region64
      $region63: #{transformer_encoder.1} parent=5 // pred_region
        // Predicated region
        $region65: #{transformer_encoder.1} parent=63 // pred_check
          %p381 = pneg %p42
        $region66: #{transformer_encoder.1} parent=63 // pred_check_branch
          %383 = sbr.rel (%p381) target = $region68
        $region67: #{transformer_encoder.1} parent=63 // pred_region
          %p384 = scmp.lt.s32.totalorder %s22, 1
          %s385 = scalar_select %p384, %s22, 1
          %s386 = smul.addr %s385, 8
          %s387 = scalar_lea.vmem %s0, %s386
        $region68: #{transformer_encoder.1} parent=63 // pred_fallthru
          _
      $region64: #{transformer_encoder.1} parent=5 // pred_fallthru
        _
      %p388 = scmp.le.s32.totalorder 1, %s22
      %p389 = scmp.lt.s32.totalorder %s22, 3
      %p390 = pnand %p388, %p389
      %p391 = pneg %p390
      // Predicated region
      $region69: #{transformer_encoder.1} parent=5 // pred_check
        _
      $region70: #{transformer_encoder.1} parent=5 // pred_check_branch
        %393 = sbr.rel (%p390) target = $region72
      $region71: #{transformer_encoder.1} parent=5 // pred_region
        %s394 = ssub.s32 %s22, 1
        %p395 = scmp.lt.s32.totalorder %s27, 1
        %s396 = scalar_select %p395, %s27, 1
        %s397 = smul.addr %s396, 8
        %s398 = scalar_lea.vmem %s0, %s397
        %p399 = pneg %p48
        %p400 = pneg %p45
        %p401 = pneg %p69
        %p402 = pneg %p66
        %p403 = pneg %p90
        %p404 = pneg %p87
        %p405 = pneg %p111
        %p406 = pneg %p108
        %p407 = pneg %p132
        %p408 = pneg %p129
        %p409 = pneg %p153
        %p410 = pneg %p150
        %p411 = pneg %p174
        %p412 = pneg %p171
        %p413 = pneg %p195
        %p414 = pneg %p192
        %p415 = pneg %p216
        %p416 = pneg %p213
        %p417 = pneg %p237
        %p418 = pneg %p234
        %p419 = pneg %p258
        %p420 = pneg %p255
        %p421 = pneg %p279
        %p422 = pneg %p276
        %p423 = pneg %p300
        %p424 = pneg %p297
        %p425 = pneg %p326
        %p426 = pneg %p323
        %s427 = sand.u32 %s313, 1
        %s428 = scalar_lea.sflag [#allocation3], %s427
        %s429 = sand.u32 %s313, 1
        %s430 = smul.addr %s429, 8
        %s431 = scalar_lea.vmem [#allocation2], %s430
        %p432 = scmp.lt.s32.totalorder %s27, 1
        %s433 = scalar_select %p432, %s27, 1
        %s434 = smul.addr %s433, 8
        %s435 = scalar_lea.vmem %s0, %s434
        %v436 = vld [vmem:[%s435] sm:$0xff]
        %v437 = vld [vmem:[%s1] sm:$0x1]
        %v438 = vld [vmem:[%s2] sm:$0x1]
        %vm439 = vcmask 261120
        %v440 = vsel %vm439, %v436, 0.0
        %441 = vadd.xlane.f32.xlu0 %v440
        %v442 = vpop.xlane.xlu0 %441
        %v443 = vrcp.pop 32.0
        %v444 = vmul.f32 32.0, %v443
        %v445 = vsub.f32 1.0, %v444
        %v446 = vmul.f32 %v443, %v445
        %v447 = vadd.f32 %v443, %v446
        %vm448 = vweird.f32 %v443
        %v449 = vsel %vm448, %v443, %v447
        %v450 = vmul.f32 %v442, %v449
        %v451 = vsub.f32 %v436, %v450
        %v452 = vmul.f32 %v451, %v451
        %v453 = vsel %vm439, %v452, 0.0
        %454 = vadd.xlane.f32.xlu0 %v453
        %v455 = vpop.xlane.xlu0 %454
        %v456 = vmul.f32 %v455, %v449
        %v457 = vadd.f32 %v456, 1e-05
        %v458 = vrsqrt.pop %v457
        %v459 = vmul.f32 %v458, %v457
        %v460 = vmul.f32 %v459, %v458
        %v461 = vmul.f32 0.5, %v460
        %v462 = vsub.f32 1.5, %v461
        %v463 = vmul.f32 %v458, %v462
        %vm464 = vweird.f32 %v457
        %vm465 = vweird.f32 %v458
        %vm466 = vmor %vm464, %vm465
        %v467 = vsel %vm466, %v458, %v463
        %v468 = vmul.f32 %v451, %v467
        %v470 = vperm.slane %v437, 0
        %v472 = vmul.f32 %v468, %v470
        %v474 = vperm.slane %v438, 0
        %v476 = vadd.f32 %v472, %v474
        %v477 = vld [vmem:[%s3] sm:$0xff]
        %v478 = vld [vmem:[%s3 + $0x8] sm:$0xff]
        %v479 = vld [vmem:[%s3 + $0x10] sm:$0xff]
        %v480 = vld [vmem:[%s3 + $0x18] sm:$0xff]
        %v481 = vld [vmem:[%s4] sm:$0x1]
        %v483 = vperm.slane %v481, 0
        %v486 = vsel %vm439, %v476, 0
        %488 = vmatpush.msra.mxu0 0.0
        %489 = vmatpush.msra.mxu0 0.0
        %490 = vmatpush.msra.mxu0 0.0
        %491 = vmatpush.msra.mxu0 0.0
        %492 = vmatpush.msra.mxu0 0.0
        %493 = vmatpush.msra.mxu0 0.0
        %494 = vmatpush.msra.mxu0 0.0
        %495 = vmatpush.msra.mxu0 0.0
        %496 = vmatpush.msra.mxu0 0.0
        %497 = vmatpush.msra.mxu0 0.0
        %498 = vmatpush.msra.mxu0 0.0
        %499 = vmatpush.msra.mxu0 0.0
        %500 = vmatpush.msra.mxu0 %v480
        %501 = vmatpush.msra.mxu0 %v479
        %502 = vmatpush.msra.mxu0 %v478
        %503 = vmatpush.msra.mxu0 %v477
        %504 = vmatmul.f32.gmra.mxu0 %v486
        %v505 = vpop.f32.mrf.mxu0
        %v506 = vadd.f32 %v483, %v505
        %507 = vdwg.mxu0
        %v508 = vlaneseq
        %v509 = vand.u32 %v508, 127
        %vm510 = vcmp.ge.s32.totalorder %v509, 0
        %vm511 = vcmp.lt.s32.totalorder %v509, 8
        %vm512 = vmand %vm510, %vm511
        %v513 = vsel %vm512, 1.0, 0.0
        %v514 = vmul.f32 %v506, %v513
        %516 = vrot.lane.b32.xlu0 %v513, 64
        %v517 = vpop.permute.xlu0 %516
        %v519 = vmul.f32 %v506, %v517
        %521 = vrot.lane.b32.xlu0 %v506, 96
        %v522 = vpop.permute.xlu0 %521
        %v524 = vsel %vm439, %v514, 0
        %v526 = vsel %vm439, %v522, 0
        %528 = vmatpush.xpose.msra.mxu0 0.0
        %529 = vmatpush.xpose.msra.mxu0 0.0
        %530 = vmatpush.xpose.msra.mxu0 0.0
        %531 = vmatpush.xpose.msra.mxu0 0.0
        %532 = vmatpush.xpose.msra.mxu0 0.0
        %533 = vmatpush.xpose.msra.mxu0 0.0
        %534 = vmatpush.xpose.msra.mxu0 0.0
        %535 = vmatpush.xpose.msra.mxu0 0.0
        %536 = vmatpush.xpose.msra.mxu0 0.0
        %537 = vmatpush.xpose.msra.mxu0 0.0
        %538 = vmatpush.xpose.msra.mxu0 0.0
        %539 = vmatpush.xpose.msra.mxu0 0.0
        %540 = vmatpush.xpose.msra.mxu0 0.0
        %541 = vmatpush.xpose.msra.mxu0 0.0
        %542 = vmatpush.xpose.msra.mxu0 0.0
        %543 = vmatpush.xpose.msra.mxu0 %v526
        %544 = vmatmul.f32.gmra.mxu0 %v524
        %v545 = vpop.f32.mrf.mxu0
        %v546 = vadd.f32 0.0, %v545
        %547 = vdwg.mxu0
        %v548 = vmul.f32 %v546, 0.35355338
        %vm549 = vcmask 64512
        %v550 = vsel %vm549, %v548, -inf
        %551 = vmax.xlane.f32.xlu0 %v550
        %v552 = vpop.xlane.xlu0 %551
        %v553 = vsub.f32 %v548, %v552
        %v554 = vmul.f32 %v553, 1.442695
        %v555 = vpow.pop %v554
        %v556 = vsel %vm549, %v555, 0.0
        %557 = vadd.xlane.f32.xlu0 %v556
        %v558 = vpop.xlane.xlu0 %557
        %v559 = vrcp.pop %v558
        %v560 = vmul.f32 %v558, %v559
        %v561 = vsub.f32 2.0, %v560
        %v562 = vmul.f32 %v559, %v561
        %v563 = vmul.f32 %v555, %v562
        %vm564 = vcmp.ge.s32.totalorder %v509, 8
        %vm565 = vcmp.lt.s32.totalorder %v509, 16
        %vm566 = vmand %vm564, %vm565
        %v567 = vsel %vm566, 1.0, 0.0
        %v568 = vmul.f32 %v506, %v567
        %570 = vrot.lane.b32.xlu0 %v567, 64
        %v571 = vpop.permute.xlu0 %570
        %v573 = vmul.f32 %v506, %v571
        %v575 = vsel %vm439, %v568, 0
        %577 = vmatpush.xpose.msra.mxu0 0.0
        %578 = vmatpush.xpose.msra.mxu0 0.0
        %579 = vmatpush.xpose.msra.mxu0 0.0
        %580 = vmatpush.xpose.msra.mxu0 0.0
        %581 = vmatpush.xpose.msra.mxu0 0.0
        %582 = vmatpush.xpose.msra.mxu0 0.0
        %583 = vmatpush.xpose.msra.mxu0 0.0
        %584 = vmatpush.xpose.msra.mxu0 0.0
        %585 = vmatpush.xpose.msra.mxu0 0.0
        %586 = vmatpush.xpose.msra.mxu0 0.0
        %587 = vmatpush.xpose.msra.mxu0 0.0
        %588 = vmatpush.xpose.msra.mxu0 0.0
        %589 = vmatpush.xpose.msra.mxu0 0.0
        %590 = vmatpush.xpose.msra.mxu0 0.0
        %591 = vmatpush.xpose.msra.mxu0 0.0
        %592 = vmatpush.xpose.msra.mxu0 %v526
        %593 = vmatmul.f32.gmra.mxu0 %v575
        %v594 = vpop.f32.mrf.mxu0
        %v595 = vadd.f32 0.0, %v594
        %596 = vdwg.mxu0
        %v597 = vmul.f32 %v595, 0.35355338
        %v598 = vsel %vm549, %v597, -inf
        %599 = vmax.xlane.f32.xlu0 %v598
        %v600 = vpop.xlane.xlu0 %599
        %v601 = vsub.f32 %v597, %v600
        %v602 = vmul.f32 %v601, 1.442695
        %v603 = vpow.pop %v602
        %v604 = vsel %vm549, %v603, 0.0
        %605 = vadd.xlane.f32.xlu0 %v604
        %v606 = vpop.xlane.xlu0 %605
        %v607 = vrcp.pop %v606
        %v608 = vmul.f32 %v606, %v607
        %v609 = vsub.f32 2.0, %v608
        %v610 = vmul.f32 %v607, %v609
        %v611 = vmul.f32 %v603, %v610
        %613 = vrot.lane.b32.xlu0 %v573, 64
        %v614 = vpop.permute.xlu0 %613
        %v617 = vsel %vm549, %v611, 0
        %619 = vmatpush.msra.mxu0 0.0
        %620 = vmatpush.msra.mxu0 0.0
        %621 = vmatpush.msra.mxu0 0.0
        %622 = vmatpush.msra.mxu0 0.0
        %623 = vmatpush.msra.mxu0 0.0
        %624 = vmatpush.msra.mxu0 0.0
        %625 = vmatpush.msra.mxu0 0.0
        %626 = vmatpush.msra.mxu0 0.0
        %627 = vmatpush.msra.mxu0 0.0
        %628 = vmatpush.msra.mxu0 0.0
        %629 = vmatpush.msra.mxu0 0.0
        %630 = vmatpush.msra.mxu0 0.0
        %631 = vmatpush.msra.mxu0 0.0
        %632 = vmatpush.msra.mxu0 0.0
        %633 = vmatpush.msra.mxu0 0.0
        %634 = vmatpush.msra.mxu0 %v614
        %635 = vmatmul.f32.gmra.mxu0 %v617
        %v636 = vpop.f32.mrf.mxu0
        %v637 = vadd.f32 0.0, %v636
        %638 = vdwg.mxu0
        %640 = vrot.lane.b32.xlu0 %v519, 64
        %v641 = vpop.permute.xlu0 %640
        %v644 = vsel %vm549, %v563, 0
        %646 = vmatpush.msra.mxu0 0.0
        %647 = vmatpush.msra.mxu0 0.0
        %648 = vmatpush.msra.mxu0 0.0
        %649 = vmatpush.msra.mxu0 0.0
        %650 = vmatpush.msra.mxu0 0.0
        %651 = vmatpush.msra.mxu0 0.0
        %652 = vmatpush.msra.mxu0 0.0
        %653 = vmatpush.msra.mxu0 0.0
        %654 = vmatpush.msra.mxu0 0.0
        %655 = vmatpush.msra.mxu0 0.0
        %656 = vmatpush.msra.mxu0 0.0
        %657 = vmatpush.msra.mxu0 0.0
        %658 = vmatpush.msra.mxu0 0.0
        %659 = vmatpush.msra.mxu0 0.0
        %660 = vmatpush.msra.mxu0 0.0
        %661 = vmatpush.msra.mxu0 %v641
        %662 = vmatmul.f32.gmra.mxu0 %v644
        %v663 = vpop.f32.mrf.mxu0
        %v664 = vadd.f32 %v637, %v663
        %665 = vdwg.mxu0
        %vm666 = vcmp.ge.s32.totalorder %v509, 16
        %vm667 = vcmp.lt.s32.totalorder %v509, 24
        %vm668 = vmand %vm666, %vm667
        %v669 = vsel %vm668, 1.0, 0.0
        %v670 = vmul.f32 %v506, %v669
        %672 = vrot.lane.b32.xlu0 %v669, 64
        %v673 = vpop.permute.xlu0 %672
        %v675 = vmul.f32 %v506, %v673
        %v677 = vsel %vm439, %v670, 0
        %679 = vmatpush.xpose.msra.mxu0 0.0
        %680 = vmatpush.xpose.msra.mxu0 0.0
        %681 = vmatpush.xpose.msra.mxu0 0.0
        %682 = vmatpush.xpose.msra.mxu0 0.0
        %683 = vmatpush.xpose.msra.mxu0 0.0
        %684 = vmatpush.xpose.msra.mxu0 0.0
        %685 = vmatpush.xpose.msra.mxu0 0.0
        %686 = vmatpush.xpose.msra.mxu0 0.0
        %687 = vmatpush.xpose.msra.mxu0 0.0
        %688 = vmatpush.xpose.msra.mxu0 0.0
        %689 = vmatpush.xpose.msra.mxu0 0.0
        %690 = vmatpush.xpose.msra.mxu0 0.0
        %691 = vmatpush.xpose.msra.mxu0 0.0
        %692 = vmatpush.xpose.msra.mxu0 0.0
        %693 = vmatpush.xpose.msra.mxu0 0.0
        %694 = vmatpush.xpose.msra.mxu0 %v526
        %695 = vmatmul.f32.gmra.mxu0 %v677
        %v696 = vpop.f32.mrf.mxu0
        %v697 = vadd.f32 0.0, %v696
        %698 = vdwg.mxu0
        %v699 = vmul.f32 %v697, 0.35355338
        %v700 = vsel %vm549, %v699, -inf
        %701 = vmax.xlane.f32.xlu0 %v700
        %v702 = vpop.xlane.xlu0 %701
        %v703 = vsub.f32 %v699, %v702
        %v704 = vmul.f32 %v703, 1.442695
        %v705 = vpow.pop %v704
        %v706 = vsel %vm549, %v705, 0.0
        %707 = vadd.xlane.f32.xlu0 %v706
        %v708 = vpop.xlane.xlu0 %707
        %v709 = vrcp.pop %v708
        %v710 = vmul.f32 %v708, %v709
        %v711 = vsub.f32 2.0, %v710
        %v712 = vmul.f32 %v709, %v711
        %v713 = vmul.f32 %v705, %v712
        %715 = vrot.lane.b32.xlu0 %v675, 64
        %v716 = vpop.permute.xlu0 %715
        %v719 = vsel %vm549, %v713, 0
        %721 = vmatpush.msra.mxu0 0.0
        %722 = vmatpush.msra.mxu0 0.0
        %723 = vmatpush.msra.mxu0 0.0
        %724 = vmatpush.msra.mxu0 0.0
        %725 = vmatpush.msra.mxu0 0.0
        %726 = vmatpush.msra.mxu0 0.0
        %727 = vmatpush.msra.mxu0 0.0
        %728 = vmatpush.msra.mxu0 0.0
        %729 = vmatpush.msra.mxu0 0.0
        %730 = vmatpush.msra.mxu0 0.0
        %731 = vmatpush.msra.mxu0 0.0
        %732 = vmatpush.msra.mxu0 0.0
        %733 = vmatpush.msra.mxu0 0.0
        %734 = vmatpush.msra.mxu0 0.0
        %735 = vmatpush.msra.mxu0 0.0
        %736 = vmatpush.msra.mxu0 %v716
        %737 = vmatmul.f32.gmra.mxu0 %v719
        %v738 = vpop.f32.mrf.mxu0
        %v739 = vadd.f32 0.0, %v738
        %740 = vdwg.mxu0
        %v741 = vadd.f32 %v664, %v739
        %vm742 = vcmp.ge.s32.totalorder %v509, 24
        %vm743 = vcmp.lt.s32.totalorder %v509, 32
        %vm744 = vmand %vm742, %vm743
        %v745 = vsel %vm744, 1.0, 0.0
        %v746 = vmul.f32 %v506, %v745
        %748 = vrot.lane.b32.xlu0 %v745, 64
        %v749 = vpop.permute.xlu0 %748
        %v751 = vmul.f32 %v506, %v749
        %v753 = vsel %vm439, %v746, 0
        %755 = vmatpush.xpose.msra.mxu0 0.0
        %756 = vmatpush.xpose.msra.mxu0 0.0
        %757 = vmatpush.xpose.msra.mxu0 0.0
        %758 = vmatpush.xpose.msra.mxu0 0.0
        %759 = vmatpush.xpose.msra.mxu0 0.0
        %760 = vmatpush.xpose.msra.mxu0 0.0
        %761 = vmatpush.xpose.msra.mxu0 0.0
        %762 = vmatpush.xpose.msra.mxu0 0.0
        %763 = vmatpush.xpose.msra.mxu0 0.0
        %764 = vmatpush.xpose.msra.mxu0 0.0
        %765 = vmatpush.xpose.msra.mxu0 0.0
        %766 = vmatpush.xpose.msra.mxu0 0.0
        %767 = vmatpush.xpose.msra.mxu0 0.0
        %768 = vmatpush.xpose.msra.mxu0 0.0
        %769 = vmatpush.xpose.msra.mxu0 0.0
        %770 = vmatpush.xpose.msra.mxu0 %v526
        %771 = vmatmul.f32.gmra.mxu0 %v753
        %v772 = vpop.f32.mrf.mxu0
        %v773 = vadd.f32 0.0, %v772
        %774 = vdwg.mxu0
        %v775 = vmul.f32 %v773, 0.35355338
        %v776 = vsel %vm549, %v775, -inf
        %777 = vmax.xlane.f32.xlu0 %v776
        %v778 = vpop.xlane.xlu0 %777
        %v779 = vsub.f32 %v775, %v778
        %v780 = vmul.f32 %v779, 1.442695
        %v781 = vpow.pop %v780
        %v782 = vsel %vm549, %v781, 0.0
        %783 = vadd.xlane.f32.xlu0 %v782
        %v784 = vpop.xlane.xlu0 %783
        %v785 = vrcp.pop %v784
        %v786 = vmul.f32 %v784, %v785
        %v787 = vsub.f32 2.0, %v786
        %v788 = vmul.f32 %v785, %v787
        %v789 = vmul.f32 %v781, %v788
        %791 = vrot.lane.b32.xlu0 %v751, 64
        %v792 = vpop.permute.xlu0 %791
        %v795 = vsel %vm549, %v789, 0
        %797 = vmatpush.msra.mxu0 0.0
        %798 = vmatpush.msra.mxu0 0.0
        %799 = vmatpush.msra.mxu0 0.0
        %800 = vmatpush.msra.mxu0 0.0
        %801 = vmatpush.msra.mxu0 0.0
        %802 = vmatpush.msra.mxu0 0.0
        %803 = vmatpush.msra.mxu0 0.0
        %804 = vmatpush.msra.mxu0 0.0
        %805 = vmatpush.msra.mxu0 0.0
        %806 = vmatpush.msra.mxu0 0.0
        %807 = vmatpush.msra.mxu0 0.0
        %808 = vmatpush.msra.mxu0 0.0
        %809 = vmatpush.msra.mxu0 0.0
        %810 = vmatpush.msra.mxu0 0.0
        %811 = vmatpush.msra.mxu0 0.0
        %812 = vmatpush.msra.mxu0 %v792
        %813 = vmatmul.f32.gmra.mxu0 %v795
        %v814 = vpop.f32.mrf.mxu0
        %v815 = vadd.f32 0.0, %v814
        %816 = vdwg.mxu0
        %v817 = vadd.f32 %v741, %v815
        %v818 = vld [vmem:[%s5] sm:$0xff]
        %v819 = vld [vmem:[%s5 + $0x8] sm:$0xff]
        %v820 = vld [vmem:[%s5 + $0x10] sm:$0xff]
        %v821 = vld [vmem:[%s5 + $0x18] sm:$0xff]
        %v822 = vld [vmem:[%s6] sm:$0x1]
        %v824 = vperm.slane %v822, 0
        %v827 = vsel %vm439, %v817, 0
        %829 = vmatpush.msra.mxu0 0.0
        %830 = vmatpush.msra.mxu0 0.0
        %831 = vmatpush.msra.mxu0 0.0
        %832 = vmatpush.msra.mxu0 0.0
        %833 = vmatpush.msra.mxu0 0.0
        %834 = vmatpush.msra.mxu0 0.0
        %835 = vmatpush.msra.mxu0 0.0
        %836 = vmatpush.msra.mxu0 0.0
        %837 = vmatpush.msra.mxu0 0.0
        %838 = vmatpush.msra.mxu0 0.0
        %839 = vmatpush.msra.mxu0 0.0
        %840 = vmatpush.msra.mxu0 0.0
        %841 = vmatpush.msra.mxu0 %v821
        %842 = vmatpush.msra.mxu0 %v820
        %843 = vmatpush.msra.mxu0 %v819
        %844 = vmatpush.msra.mxu0 %v818
        %845 = vmatmul.f32.gmra.mxu0 %v827
        %v846 = vpop.f32.mrf.mxu0
        %v847 = vadd.f32 %v824, %v846
        %848 = vdwg.mxu0
        %v849 = vadd.f32 %v436, %v847
        %v850 = vld [vmem:[%s7] sm:$0x1]
        %v851 = vld [vmem:[%s8] sm:$0x1]
        %v852 = vsel %vm439, %v849, 0.0
        %853 = vadd.xlane.f32.xlu0 %v852
        %v854 = vpop.xlane.xlu0 %853
        %v855 = vmul.f32 %v854, %v449
        %v856 = vsub.f32 %v849, %v855
        %v857 = vmul.f32 %v856, %v856
        %v858 = vsel %vm439, %v857, 0.0
        %859 = vadd.xlane.f32.xlu0 %v858
        %v860 = vpop.xlane.xlu0 %859
        %v861 = vmul.f32 %v860, %v449
        %v862 = vadd.f32 %v861, 1e-05
        %v863 = vrsqrt.pop %v862
        %v864 = vmul.f32 %v863, %v862
        %v865 = vmul.f32 %v864, %v863
        %v866 = vmul.f32 0.5, %v865
        %v867 = vsub.f32 1.5, %v866
        %v868 = vmul.f32 %v863, %v867
        %vm869 = vweird.f32 %v862
        %vm870 = vweird.f32 %v863
        %vm871 = vmor %vm869, %vm870
        %v872 = vsel %vm871, %v863, %v868
        %v873 = vmul.f32 %v856, %v872
        %v875 = vperm.slane %v850, 0
        %v877 = vmul.f32 %v873, %v875
        %v879 = vperm.slane %v851, 0
        %v881 = vadd.f32 %v877, %v879
        %v882 = vld [vmem:[%s9] sm:$0xff]
        %v883 = vld [vmem:[%s9 + $0x8] sm:$0xff]
        %v884 = vld [vmem:[%s9 + $0x10] sm:$0xff]
        %v885 = vld [vmem:[%s9 + $0x18] sm:$0xff]
        %v886 = vld [vmem:[%s10] sm:$0x1]
        %v888 = vperm.slane %v886, 0
        %v891 = vsel %vm439, %v881, 0
        %893 = vmatpush.msra.mxu0 0.0
        %894 = vmatpush.msra.mxu0 0.0
        %895 = vmatpush.msra.mxu0 0.0
        %896 = vmatpush.msra.mxu0 0.0
        %897 = vmatpush.msra.mxu0 0.0
        %898 = vmatpush.msra.mxu0 0.0
        %899 = vmatpush.msra.mxu0 0.0
        %900 = vmatpush.msra.mxu0 0.0
        %901 = vmatpush.msra.mxu0 0.0
        %902 = vmatpush.msra.mxu0 0.0
        %903 = vmatpush.msra.mxu0 0.0
        %904 = vmatpush.msra.mxu0 0.0
        %905 = vmatpush.msra.mxu0 %v885
        %906 = vmatpush.msra.mxu0 %v884
        %907 = vmatpush.msra.mxu0 %v883
        %908 = vmatpush.msra.mxu0 %v882
        %909 = vmatmul.f32.gmra.mxu0 %v891
        %v910 = vpop.f32.mrf.mxu0
        %v911 = vadd.f32 %v888, %v910
        %912 = vdwg.mxu0
        %v913 = vmul.f32 %v911, 0.5
        %v914 = vrcp.pop 1.4142135
        %v915 = vmul.f32 1.4142135, %v914
        %v916 = vsub.f32 1.0, %v915
        %v917 = vmul.f32 %v914, %v916
        %v918 = vadd.f32 %v914, %v917
        %vm919 = vweird.f32 %v914
        %v920 = vsel %vm919, %v914, %v918
        %v921 = vmul.f32 %v911, %v920
        %v922 = vmul.f32 %v921, %v921
        %v923 = vmin.f32 16.0, %v922
        %v924 = vmul.f32 %v923, 2.1237322e-06
        %v925 = vadd.f32 %v924, 0.00028619796
        %v926 = vmul.f32 %v923, %v925
        %v927 = vadd.f32 %v926, 0.0036580483
        %v928 = vmul.f32 %v923, %v927
        %v929 = vadd.f32 %v928, 0.05243302
        %v930 = vmul.f32 %v923, %v929
        %v931 = vadd.f32 %v930, 0.18741608
        %v932 = vmul.f32 %v923, %v931
        %v933 = vadd.f32 %v932, 1.1283791
        %v934 = vmul.f32 %v921, %v933
        %v935 = vmul.f32 %v923, 3.8918573e-05
        %v936 = vadd.f32 %v935, 0.001143296
        %v937 = vmul.f32 %v923, %v936
        %v938 = vadd.f32 %v937, 0.014752088
        %v939 = vmul.f32 %v923, %v938
        %v940 = vadd.f32 %v939, 0.112945676
        %v941 = vmul.f32 %v923, %v940
        %v942 = vadd.f32 %v941, 0.4994258
        %v943 = vmul.f32 %v923, %v942
        %v944 = vadd.f32 %v943, 1.0
        %v945 = vrcp.pop %v944
        %v946 = vmul.f32 %v944, %v945
        %v947 = vsub.f32 1.0, %v946
        %v948 = vmul.f32 %v945, %v947
        %v949 = vadd.f32 %v945, %v948
        %vm950 = vweird.f32 %v944
        %vm951 = vweird.f32 %v945
        %vm952 = vmor %vm950, %vm951
        %v953 = vsel %vm952, %v945, %v949
        %v954 = vand.u32 2147483647, %v944
        %vm955 = vcmp.eq.f32.partialorder %v954, 8.507059e+37
        %v956 = vand.u32 %v944, 2147483648
        %v957 = vor.u32 1.1754944e-38, %v956
        %v958 = vsel %vm955, %v957, %v953
        %v959 = vmul.f32 %v934, %v958
        %v960 = vmin.f32 %v959, 1.0
        %v961 = vmax.f32 %v960, -1.0
        %v962 = vadd.f32 %v961, 1.0
        %v963 = vmul.f32 %v913, %v962
        %v964 = vld [vmem:[%s11] sm:$0xff]
        %v965 = vld [vmem:[%s11 + $0x8] sm:$0xff]
        %v966 = vld [vmem:[%s11 + $0x10] sm:$0xff]
        %v967 = vld [vmem:[%s11 + $0x18] sm:$0xff]
        %v968 = vld [vmem:[%s11 + $0x20] sm:$0xff]
        %v969 = vld [vmem:[%s11 + $0x28] sm:$0xff]
        %v970 = vld [vmem:[%s11 + $0x30] sm:$0xff]
        %v971 = vld [vmem:[%s11 + $0x38] sm:$0xff]
        %v972 = vld [vmem:[%s11 + $0x40] sm:$0xff]
        %v973 = vld [vmem:[%s11 + $0x48] sm:$0xff]
        %v974 = vld [vmem:[%s11 + $0x50] sm:$0xff]
        %v975 = vld [vmem:[%s11 + $0x58] sm:$0xff]
        %v976 = vld [vmem:[%s11 + $0x60] sm:$0xff]
        %v977 = vld [vmem:[%s11 + $0x68] sm:$0xff]
        %v978 = vld [vmem:[%s11 + $0x70] sm:$0xff]
        %v979 = vld [vmem:[%s11 + $0x78] sm:$0xff]
        %v980 = vld [vmem:[%s12] sm:$0x1]
        %v982 = vperm.slane %v980, 0
        %984 = vmatpush.msra.mxu0 %v979
        %985 = vmatpush.msra.mxu0 %v978
        %986 = vmatpush.msra.mxu0 %v977
        %987 = vmatpush.msra.mxu0 %v976
        %988 = vmatpush.msra.mxu0 %v975
        %989 = vmatpush.msra.mxu0 %v974
        %990 = vmatpush.msra.mxu0 %v973
        %991 = vmatpush.msra.mxu0 %v972
        %992 = vmatpush.msra.mxu0 %v971
        %993 = vmatpush.msra.mxu0 %v970
        %994 = vmatpush.msra.mxu0 %v969
        %995 = vmatpush.msra.mxu0 %v968
        %996 = vmatpush.msra.mxu0 %v967
        %997 = vmatpush.msra.mxu0 %v966
        %998 = vmatpush.msra.mxu0 %v965
        %999 = vmatpush.msra.mxu0 %v964
        %1000 = vmatmul.f32.gmra.mxu0 %v963
        %v1001 = vpop.f32.mrf.mxu0
        %v1002 = vadd.f32 %v982, %v1001
        %1003 = vdwg.mxu0
        %v1004 = vadd.f32 %v849, %v1002
        %1005 = vst.msk [vmem:[%s431] sm:$0xff] %vm439, %v1004
        %s1006 = sand.u32 %s313, 1
        %s1007 = scalar_lea.sflag [#allocation3], %s1006
        %s1008 = sand.u32 %s313, 1
        %s1009 = smul.addr %s1008, 8
        %s1010 = scalar_lea.vmem [#allocation2], %s1009
        // Predicated region
        $region73: #{transformer_encoder.1} parent=71 // pred_check
          %p1011 = pneg %p323
        $region74: #{transformer_encoder.1} parent=71 // pred_check_branch
          %1013 = sbr.rel (%p1011) target = $region76
        $region75: #{transformer_encoder.1} parent=71 // pred_region
          %1015 = vsyncadd %s1007, 0
          %s1016 = smul.addr %s27, 8
          %s1017 = scalar_lea.hbm %s13, %s1016
          %s1019 = sshll.u32 %s1010, 4
          %s1020 = int_to_ptr.vmem [resolvable:$true] %s1019
          %s1021 = sshll.u32 %s1017, 4
          %s1022 = int_to_ptr.hbm [resolvable:$true] %s1021
          %1024 = dma.vmem_to_hbm [thread:$0]  %s1020, 128, %s1022, %s1007
        $region76: #{transformer_encoder.1} parent=71 // pred_fallthru
          _
      $region72: #{transformer_encoder.1} parent=5 // pred_fallthru
        _
      %p1025 = scmp.le.s32.totalorder 2, %s22
      // Predicated region
      $region77: #{transformer_encoder.1} parent=5 // pred_check
        %p1026 = pneg %p1025
      $region78: #{transformer_encoder.1} parent=5 // pred_check_branch
        %1028 = sbr.rel (%p1026) target = $region80
      $region79: #{transformer_encoder.1} parent=5 // pred_region
        %s1029 = ssub.s32 %s22, 2
        // Predicated region
        $region81: #{transformer_encoder.1} parent=79 // pred_check
          %p1030 = pneg %p329
        $region82: #{transformer_encoder.1} parent=79 // pred_check_branch
          %1032 = sbr.rel (%p1030) target = $region84
        $region83: #{transformer_encoder.1} parent=79 // pred_region
          %s1033 = sand.u32 %s314, 1
          %s1034 = scalar_lea.sflag [#allocation3], %s1033
          %s1035 = sand.u32 %s314, 1
          %s1036 = smul.addr %s1035, 8
          %s1037 = scalar_lea.vmem [#allocation2], %s1036
          %1039 = dma.done %s1034, 128
        $region84: #{transformer_encoder.1} parent=79 // pred_fallthru
          _
      $region80: #{transformer_encoder.1} parent=5 // pred_fallthru
        _
    $region6: #{transformer_encoder.1} parent=1 // loop_footer
      %s26 = sadd.s32 1, %s22
    $region7: #{transformer_encoder.1} parent=1 // loop_footer_branch
      %21 = sbr.rel target = $region3
    $region8: #{transformer_encoder.1} parent=1 // loop_exit
      _
    %1040 = vsyncpa [#allocation3], 1
    %s1041 = scalar_lea.sflag [#allocation3], 1
    %1042 = vsyncpa %s1041, 1

</llo_original>
